<compile_context>
chip_gen: v6e
topology: v6e:2x2x1
jax: 0.10.0
libtpu: 0.0.40
codegen_flags: <defaults>
</compile_context>

<pallas_src>
import math
import jax
import jax.numpy as jnp
from jax import lax
from jax.experimental import pallas as pl
from jax.experimental.pallas import tpu as pltpu


def _mha_kernel(num_heads, head_dim):
    scale = 1.0 / math.sqrt(head_dim)
    # Contract the last axis of both operands (x @ W.T without a transpose).
    nt_dims = (((1,), (1,)), ((), ()))

    def kernel(xq_ref, xk_ref, xv_ref,
               wq_ref, bq_ref, wk_ref, bk_ref, wv_ref, bv_ref,
               wo_t_ref, bo_ref, out_ref):
        # Activation tiles (bf16): xq is the query tile, xk/xv the full sequence.
        xq = xq_ref[...]            # (TQ, E)
        xk = xk_ref[...]            # (S,  E)
        xv = xv_ref[...]            # (S,  E)

        tq = xq.shape[0]
        emb = out_ref.shape[-1]
        acc = jnp.zeros((tq, emb), jnp.float32)   # fused out-projection accumulator

        for h in range(num_heads):
            lo = h * head_dim
            hi = lo + head_dim

            # Per-head projections: slice weight ROWS (sublane slice, cheap view)
            # and contract on in_features directly.  y = x @ W[lo:hi, :].T + b.
            q_h = lax.dot_general(xq, wq_ref[lo:hi, :], nt_dims,
                                  preferred_element_type=jnp.float32)
            q_h = (q_h + bq_ref[h:h + 1, :]) * scale        # fold 1/sqrt(hd) into q
            k_h = lax.dot_general(xk, wk_ref[lo:hi, :], nt_dims,
                                  preferred_element_type=jnp.float32)
            k_h = k_h + bk_ref[h:h + 1, :]
            v_h = lax.dot_general(xv, wv_ref[lo:hi, :], nt_dims,
                                  preferred_element_type=jnp.float32)
            v_h = v_h + bv_ref[h:h + 1, :]

            # scores = q_h @ k_h.T (contraction on head_dim, no transpose).
            scores = lax.dot_general(q_h.astype(jnp.bfloat16),
                                     k_h.astype(jnp.bfloat16), nt_dims,
                                     preferred_element_type=jnp.float32)  # (TQ, S)

            # Softmax in f32 (VPU/EUP); divide -> approx reciprocal on the EUP.
            m = jnp.max(scores, axis=-1, keepdims=True)
            e = jnp.exp(scores - m)
            denom = jnp.sum(e, axis=-1, keepdims=True)
            attn = e * pl.reciprocal(denom, approx=True)

            head_out = jnp.dot(attn.astype(jnp.bfloat16),
                               v_h.astype(jnp.bfloat16),
                               preferred_element_type=jnp.float32)        # (TQ, hd)

            # Fused output projection (no concat):  acc += head_out @ Wo.T[lo:hi, :]
            acc = acc + jnp.dot(head_out.astype(jnp.bfloat16),
                                wo_t_ref[lo:hi, :],
                                preferred_element_type=jnp.float32)       # (TQ, E)

        out_ref[...] = (acc + bo_ref[...]).astype(out_ref.dtype)

    return kernel


def multi_head_attention(query, key, value, params, num_heads, block_q=None):
    """query/key/value: (B, S, E); params in PyTorch nn.Linear layout."""
    B, S, E = query.shape
    assert E % num_heads == 0, "embed_dim must be divisible by num_heads"
    head_dim = E // num_heads

    if block_q is None:
        block_q = min(S, 256)
    if S % block_q != 0:
        block_q = S                     # fallback: one query tile per batch element

    out_dtype = query.dtype
    bf16 = lambda x: x.astype(jnp.bfloat16)

    # Weights as bf16 MXU operands.  q/k/v weights stay in (out, in) layout and
    # are row-sliced per head inside the kernel; Wo is pre-transposed ONCE to
    # (in, out) layout so its per-head slice is also a row (sublane) slice.
    wq, wk, wv = bf16(params["wq"]), bf16(params["wk"]), bf16(params["wv"])
    wo_t = bf16(params["wo"].T)
    # Biases in f32, reshaped so the per-head slice is a sublane row.
    bq = params["bq"].reshape(num_heads, head_dim).astype(jnp.float32)
    bk = params["bk"].reshape(num_heads, head_dim).astype(jnp.float32)
    bv = params["bv"].reshape(num_heads, head_dim).astype(jnp.float32)
    bo = params["bo"].reshape(1, E).astype(jnp.float32)

    q_in, k_in, v_in = bf16(query), bf16(key), bf16(value)

    grid = (B, S // block_q)

    q_spec   = pl.BlockSpec((None, block_q, E), lambda b, qi: (b, qi, 0))
    kv_spec  = pl.BlockSpec((None, S, E),       lambda b, qi: (b, 0, 0))
    w_spec   = pl.BlockSpec((E, E),             lambda b, qi: (0, 0))
    bh_spec  = pl.BlockSpec((num_heads, head_dim), lambda b, qi: (0, 0))
    bo_spec  = pl.BlockSpec((1, E),             lambda b, qi: (0, 0))
    out_spec = pl.BlockSpec((None, block_q, E), lambda b, qi: (b, qi, 0))

    out = pl.pallas_call(
        _mha_kernel(num_heads, head_dim),
        out_shape=jax.ShapeDtypeStruct((B, S, E), out_dtype),
        grid_spec=pltpu.PrefetchScalarGridSpec(
            num_scalar_prefetch=0,
            grid=grid,
            in_specs=[
                q_spec, kv_spec, kv_spec,
                w_spec, bh_spec,       # wq, bq
                w_spec, bh_spec,       # wk, bk
                w_spec, bh_spec,       # wv, bv
                w_spec, bo_spec,       # wo (pre-transposed), bo
            ],
            out_specs=out_spec,
        ),
        compiler_params=pltpu.CompilerParams(
            dimension_semantics=("parallel", "parallel"),
        ),
    )(q_in, k_in, v_in, wq, bq, wk, bk, wv, bv, wo_t, bo)
    return out


def _reference_mha(query, key, value, params, num_heads):
    """Plain-JAX f32 reference matching the PyTorch forward exactly (mask=None)."""
    B, S, E = query.shape
    hd = E // num_heads
    q = query @ params["wq"].T + params["bq"]
    k = key @ params["wk"].T + params["bk"]
    v = value @ params["wv"].T + params["bv"]
    q = q.reshape(B, S, num_heads, hd).transpose(0, 2, 1, 3)
    k = k.reshape(B, S, num_heads, hd).transpose(0, 2, 1, 3)
    v = v.reshape(B, S, num_heads, hd).transpose(0, 2, 1, 3)
    scores = jnp.einsum("bhqd,bhkd->bhqk", q, k) / math.sqrt(hd)
    attn = jax.nn.softmax(scores, axis=-1)
    out = jnp.einsum("bhqk,bhkd->bhqd", attn, v)
    out = out.transpose(0, 2, 1, 3).reshape(B, S, E)
    return out @ params["wo"].T + params["bo"]


if __name__ == "__main__":
    B, S, E, H = 2, 8, 32, 4

    key_root = jax.random.PRNGKey(0)
    ks = jax.random.split(key_root, 12)

    bound = 1.0 / math.sqrt(E)
    params = {
        "wq": jax.random.uniform(ks[0], (E, E), jnp.float32, -bound, bound),
        "bq": jax.random.uniform(ks[1], (E,), jnp.float32, -bound, bound),
        "wk": jax.random.uniform(ks[2], (E, E), jnp.float32, -bound, bound),
        "bk": jax.random.uniform(ks[3], (E,), jnp.float32, -bound, bound),
        "wv": jax.random.uniform(ks[4], (E, E), jnp.float32, -bound, bound),
        "bv": jax.random.uniform(ks[5], (E,), jnp.float32, -bound, bound),
        "wo": jax.random.uniform(ks[6], (E, E), jnp.float32, -bound, bound),
        "bo": jax.random.uniform(ks[7], (E,), jnp.float32, -bound, bound),
    }

    query = jax.random.normal(ks[8], (B, S, E), jnp.float32)
    key = jax.random.normal(ks[9], (B, S, E), jnp.float32)
    value = jax.random.normal(ks[10], (B, S, E), jnp.float32)

    out = multi_head_attention(query, key, value, params, H)
    out = jax.block_until_ready(out)

    ref = _reference_mha(query, key, value, params, H)
    assert out.shape == (B, S, E)
    # Tolerance loosened vs. the pure-f32 version: matmul operands are bf16
    # (f32 accumulation) and the softmax uses an approx reciprocal.
    assert jnp.allclose(out, ref, atol=5e-2, rtol=5e-2), "mismatch vs reference"

    print("KERNEL_OK")
</pallas_src>

<mosaic_0001>
module attributes {stable_mosaic.version = 11 : i64} {
  func.func @kernel(%arg0: i32, %arg1: i32, %arg2: memref<1x8x32xbf16, #tpu.memory_space<vmem>>, %arg3: memref<1x8x32xbf16, #tpu.memory_space<vmem>>, %arg4: memref<1x8x32xbf16, #tpu.memory_space<vmem>>, %arg5: memref<32x32xbf16, #tpu.memory_space<vmem>>, %arg6: memref<4x8xf32, #tpu.memory_space<vmem>>, %arg7: memref<32x32xbf16, #tpu.memory_space<vmem>>, %arg8: memref<4x8xf32, #tpu.memory_space<vmem>>, %arg9: memref<32x32xbf16, #tpu.memory_space<vmem>>, %arg10: memref<4x8xf32, #tpu.memory_space<vmem>>, %arg11: memref<32x32xbf16, #tpu.memory_space<vmem>>, %arg12: memref<1x32xf32, #tpu.memory_space<vmem>>, %arg13: memref<1x8x32xf32, #tpu.memory_space<vmem>>) attributes {dimension_semantics = [#tpu.dimension_semantics<parallel>, #tpu.dimension_semantics<parallel>], iteration_bounds = array<i64: 2, 1>, scalar_prefetch = 0 : i64, scratch_operands = 0 : i64, tpu.core_type = #tpu.core_type<tc>, window_params = [{transform_indices = @transform_0, window_bounds = array<i64: 1, 8, 32>}, {transform_indices = @transform_1, window_bounds = array<i64: 1, 8, 32>}, {transform_indices = @transform_2, window_bounds = array<i64: 1, 8, 32>}, {pipeline_mode = #tpu.pipeline_mode<synchronous>, transform_indices = @transform_3, window_bounds = array<i64: 32, 32>}, {pipeline_mode = #tpu.pipeline_mode<synchronous>, transform_indices = @transform_4, window_bounds = array<i64: 4, 8>}, {pipeline_mode = #tpu.pipeline_mode<synchronous>, transform_indices = @transform_5, window_bounds = array<i64: 32, 32>}, {pipeline_mode = #tpu.pipeline_mode<synchronous>, transform_indices = @transform_6, window_bounds = array<i64: 4, 8>}, {pipeline_mode = #tpu.pipeline_mode<synchronous>, transform_indices = @transform_7, window_bounds = array<i64: 32, 32>}, {pipeline_mode = #tpu.pipeline_mode<synchronous>, transform_indices = @transform_8, window_bounds = array<i64: 4, 8>}, {pipeline_mode = #tpu.pipeline_mode<synchronous>, transform_indices = @transform_9, window_bounds = array<i64: 32, 32>}, {pipeline_mode = #tpu.pipeline_mode<synchronous>, transform_indices = @transform_10, window_bounds = array<i64: 1, 32>}, {transform_indices = @transform_11, window_bounds = array<i64: 1, 8, 32>}]} {
    %c0 = arith.constant 0 : index
    %c0_0 = arith.constant 0 : index
    %c0_1 = arith.constant 0 : index
    %0 = vector.load %arg2[%c0, %c0_0, %c0_1] : memref<1x8x32xbf16, #tpu.memory_space<vmem>>, vector<1x8x32xbf16>
    %1 = vector.shape_cast %0 : vector<1x8x32xbf16> to vector<8x32xbf16>
    %c0_2 = arith.constant 0 : index
    %c0_3 = arith.constant 0 : index
    %c0_4 = arith.constant 0 : index
    %2 = vector.load %arg3[%c0_2, %c0_3, %c0_4] : memref<1x8x32xbf16, #tpu.memory_space<vmem>>, vector<1x8x32xbf16>
    %3 = vector.shape_cast %2 : vector<1x8x32xbf16> to vector<8x32xbf16>
    %c0_5 = arith.constant 0 : index
    %c0_6 = arith.constant 0 : index
    %c0_7 = arith.constant 0 : index
    %4 = vector.load %arg4[%c0_5, %c0_6, %c0_7] : memref<1x8x32xbf16, #tpu.memory_space<vmem>>, vector<1x8x32xbf16>
    %5 = vector.shape_cast %4 : vector<1x8x32xbf16> to vector<8x32xbf16>
    %cst = arith.constant 0.000000e+00 : f32
    %6 = vector.broadcast %cst : f32 to vector<8x32xf32>
    %c0_8 = arith.constant 0 : index
    %c0_9 = arith.constant 0 : index
    %7 = vector.load %arg5[%c0_8, %c0_9] : memref<32x32xbf16, #tpu.memory_space<vmem>>, vector<8x32xbf16>
    %cst_10 = arith.constant dense<0.000000e+00> : vector<8x8xf32>
    %8 = tpu.matmul %1, %7, %cst_10 {dimension_numbers = #tpu.dot_dimension_numbers<[1], [1], [0], [0], [0, 0, 1, 0], [], []>} : vector<8x32xbf16>, vector<8x32xbf16>, vector<8x8xf32> -> vector<8x8xf32>
    %c0_11 = arith.constant 0 : index
    %c0_12 = arith.constant 0 : index
    %9 = vector.load %arg6[%c0_11, %c0_12] : memref<4x8xf32, #tpu.memory_space<vmem>>, vector<1x8xf32>
    %10 = vector.broadcast %9 : vector<1x8xf32> to vector<8x8xf32>
    %11 = arith.addf %8, %10 : vector<8x8xf32>
    %cst_13 = arith.constant 0.353553385 : f32
    %12 = vector.broadcast %cst_13 : f32 to vector<8x8xf32>
    %13 = arith.mulf %11, %12 : vector<8x8xf32>
    %c0_14 = arith.constant 0 : index
    %c0_15 = arith.constant 0 : index
    %14 = vector.load %arg7[%c0_14, %c0_15] : memref<32x32xbf16, #tpu.memory_space<vmem>>, vector<8x32xbf16>
    %cst_16 = arith.constant dense<0.000000e+00> : vector<8x8xf32>
    %15 = tpu.matmul %3, %14, %cst_16 {dimension_numbers = #tpu.dot_dimension_numbers<[1], [1], [0], [0], [0, 0, 1, 0], [], []>} : vector<8x32xbf16>, vector<8x32xbf16>, vector<8x8xf32> -> vector<8x8xf32>
    %c0_17 = arith.constant 0 : index
    %c0_18 = arith.constant 0 : index
    %16 = vector.load %arg8[%c0_17, %c0_18] : memref<4x8xf32, #tpu.memory_space<vmem>>, vector<1x8xf32>
    %17 = vector.broadcast %16 : vector<1x8xf32> to vector<8x8xf32>
    %18 = arith.addf %15, %17 : vector<8x8xf32>
    %c0_19 = arith.constant 0 : index
    %c0_20 = arith.constant 0 : index
    %19 = vector.load %arg9[%c0_19, %c0_20] : memref<32x32xbf16, #tpu.memory_space<vmem>>, vector<8x32xbf16>
    %cst_21 = arith.constant dense<0.000000e+00> : vector<8x8xf32>
    %20 = tpu.matmul %5, %19, %cst_21 {dimension_numbers = #tpu.dot_dimension_numbers<[1], [1], [0], [0], [0, 0, 1, 0], [], []>} : vector<8x32xbf16>, vector<8x32xbf16>, vector<8x8xf32> -> vector<8x8xf32>
    %c0_22 = arith.constant 0 : index
    %c0_23 = arith.constant 0 : index
    %21 = vector.load %arg10[%c0_22, %c0_23] : memref<4x8xf32, #tpu.memory_space<vmem>>, vector<1x8xf32>
    %22 = vector.broadcast %21 : vector<1x8xf32> to vector<8x8xf32>
    %23 = arith.addf %20, %22 : vector<8x8xf32>
    %24 = arith.truncf %13 : vector<8x8xf32> to vector<8x8xbf16>
    %25 = arith.truncf %18 : vector<8x8xf32> to vector<8x8xbf16>
    %cst_24 = arith.constant dense<0.000000e+00> : vector<8x8xf32>
    %26 = tpu.matmul %24, %25, %cst_24 {dimension_numbers = #tpu.dot_dimension_numbers<[1], [1], [0], [0], [0, 0, 1, 0], [], []>} : vector<8x8xbf16>, vector<8x8xbf16>, vector<8x8xf32> -> vector<8x8xf32>
    %cst_25 = arith.constant dense<0xFF800000> : vector<8xf32>
    %27 = vector.multi_reduction <maximumf>, %26, %cst_25 [1] : vector<8x8xf32> to vector<8xf32>
    %28 = vector.shape_cast %27 : vector<8xf32> to vector<8x1xf32>
    %29 = vector.broadcast %28 : vector<8x1xf32> to vector<8x8xf32>
    %30 = arith.subf %26, %29 : vector<8x8xf32>
    %31 = math.exp %30 : vector<8x8xf32>
    %cst_26 = arith.constant dense<0.000000e+00> : vector<8xf32>
    %32 = vector.multi_reduction <add>, %31, %cst_26 [1] : vector<8x8xf32> to vector<8xf32>
    %33 = vector.shape_cast %32 : vector<8xf32> to vector<8x1xf32>
    %34 = tpu.reciprocal %33 {approx = true} : vector<8x1xf32> -> vector<8x1xf32>
    %35 = vector.broadcast %34 : vector<8x1xf32> to vector<8x8xf32>
    %36 = arith.mulf %31, %35 : vector<8x8xf32>
    %37 = arith.truncf %36 : vector<8x8xf32> to vector<8x8xbf16>
    %38 = arith.truncf %23 : vector<8x8xf32> to vector<8x8xbf16>
    %cst_27 = arith.constant dense<0.000000e+00> : vector<8x8xf32>
    %39 = tpu.matmul %37, %38, %cst_27 {dimension_numbers = #tpu.dot_dimension_numbers<[1], [0], [0], [1], [0, 0, 1, 1], [], []>} : vector<8x8xbf16>, vector<8x8xbf16>, vector<8x8xf32> -> vector<8x8xf32>
    %40 = arith.truncf %39 : vector<8x8xf32> to vector<8x8xbf16>
    %c0_28 = arith.constant 0 : index
    %c0_29 = arith.constant 0 : index
    %41 = vector.load %arg11[%c0_28, %c0_29] : memref<32x32xbf16, #tpu.memory_space<vmem>>, vector<8x32xbf16>
    %cst_30 = arith.constant dense<0.000000e+00> : vector<8x32xf32>
    %42 = tpu.matmul %40, %41, %cst_30 {dimension_numbers = #tpu.dot_dimension_numbers<[1], [0], [0], [1], [0, 0, 1, 1], [], []>} : vector<8x8xbf16>, vector<8x32xbf16>, vector<8x32xf32> -> vector<8x32xf32>
    %43 = arith.addf %6, %42 : vector<8x32xf32>
    %c8 = arith.constant 8 : index
    %c0_31 = arith.constant 0 : index
    %44 = vector.load %arg5[%c8, %c0_31] : memref<32x32xbf16, #tpu.memory_space<vmem>>, vector<8x32xbf16>
    %cst_32 = arith.constant dense<0.000000e+00> : vector<8x8xf32>
    %45 = tpu.matmul %1, %44, %cst_32 {dimension_numbers = #tpu.dot_dimension_numbers<[1], [1], [0], [0], [0, 0, 1, 0], [], []>} : vector<8x32xbf16>, vector<8x32xbf16>, vector<8x8xf32> -> vector<8x8xf32>
    %c1 = arith.constant 1 : index
    %c0_33 = arith.constant 0 : index
    %46 = vector.load %arg6[%c1, %c0_33] : memref<4x8xf32, #tpu.memory_space<vmem>>, vector<1x8xf32>
    %47 = vector.broadcast %46 : vector<1x8xf32> to vector<8x8xf32>
    %48 = arith.addf %45, %47 : vector<8x8xf32>
    %cst_34 = arith.constant 0.353553385 : f32
    %49 = vector.broadcast %cst_34 : f32 to vector<8x8xf32>
    %50 = arith.mulf %48, %49 : vector<8x8xf32>
    %c8_35 = arith.constant 8 : index
    %c0_36 = arith.constant 0 : index
    %51 = vector.load %arg7[%c8_35, %c0_36] : memref<32x32xbf16, #tpu.memory_space<vmem>>, vector<8x32xbf16>
    %cst_37 = arith.constant dense<0.000000e+00> : vector<8x8xf32>
    %52 = tpu.matmul %3, %51, %cst_37 {dimension_numbers = #tpu.dot_dimension_numbers<[1], [1], [0], [0], [0, 0, 1, 0], [], []>} : vector<8x32xbf16>, vector<8x32xbf16>, vector<8x8xf32> -> vector<8x8xf32>
    %c1_38 = arith.constant 1 : index
    %c0_39 = arith.constant 0 : index
    %53 = vector.load %arg8[%c1_38, %c0_39] : memref<4x8xf32, #tpu.memory_space<vmem>>, vector<1x8xf32>
    %54 = vector.broadcast %53 : vector<1x8xf32> to vector<8x8xf32>
    %55 = arith.addf %52, %54 : vector<8x8xf32>
    %c8_40 = arith.constant 8 : index
    %c0_41 = arith.constant 0 : index
    %56 = vector.load %arg9[%c8_40, %c0_41] : memref<32x32xbf16, #tpu.memory_space<vmem>>, vector<8x32xbf16>
    %cst_42 = arith.constant dense<0.000000e+00> : vector<8x8xf32>
    %57 = tpu.matmul %5, %56, %cst_42 {dimension_numbers = #tpu.dot_dimension_numbers<[1], [1], [0], [0], [0, 0, 1, 0], [], []>} : vector<8x32xbf16>, vector<8x32xbf16>, vector<8x8xf32> -> vector<8x8xf32>
    %c1_43 = arith.constant 1 : index
    %c0_44 = arith.constant 0 : index
    %58 = vector.load %arg10[%c1_43, %c0_44] : memref<4x8xf32, #tpu.memory_space<vmem>>, vector<1x8xf32>
    %59 = vector.broadcast %58 : vector<1x8xf32> to vector<8x8xf32>
    %60 = arith.addf %57, %59 : vector<8x8xf32>
    %61 = arith.truncf %50 : vector<8x8xf32> to vector<8x8xbf16>
    %62 = arith.truncf %55 : vector<8x8xf32> to vector<8x8xbf16>
    %cst_45 = arith.constant dense<0.000000e+00> : vector<8x8xf32>
    %63 = tpu.matmul %61, %62, %cst_45 {dimension_numbers = #tpu.dot_dimension_numbers<[1], [1], [0], [0], [0, 0, 1, 0], [], []>} : vector<8x8xbf16>, vector<8x8xbf16>, vector<8x8xf32> -> vector<8x8xf32>
    %cst_46 = arith.constant dense<0xFF800000> : vector<8xf32>
    %64 = vector.multi_reduction <maximumf>, %63, %cst_46 [1] : vector<8x8xf32> to vector<8xf32>
    %65 = vector.shape_cast %64 : vector<8xf32> to vector<8x1xf32>
    %66 = vector.broadcast %65 : vector<8x1xf32> to vector<8x8xf32>
    %67 = arith.subf %63, %66 : vector<8x8xf32>
    %68 = math.exp %67 : vector<8x8xf32>
    %cst_47 = arith.constant dense<0.000000e+00> : vector<8xf32>
    %69 = vector.multi_reduction <add>, %68, %cst_47 [1] : vector<8x8xf32> to vector<8xf32>
    %70 = vector.shape_cast %69 : vector<8xf32> to vector<8x1xf32>
    %71 = tpu.reciprocal %70 {approx = true} : vector<8x1xf32> -> vector<8x1xf32>
    %72 = vector.broadcast %71 : vector<8x1xf32> to vector<8x8xf32>
    %73 = arith.mulf %68, %72 : vector<8x8xf32>
    %74 = arith.truncf %73 : vector<8x8xf32> to vector<8x8xbf16>
    %75 = arith.truncf %60 : vector<8x8xf32> to vector<8x8xbf16>
    %cst_48 = arith.constant dense<0.000000e+00> : vector<8x8xf32>
    %76 = tpu.matmul %74, %75, %cst_48 {dimension_numbers = #tpu.dot_dimension_numbers<[1], [0], [0], [1], [0, 0, 1, 1], [], []>} : vector<8x8xbf16>, vector<8x8xbf16>, vector<8x8xf32> -> vector<8x8xf32>
    %77 = arith.truncf %76 : vector<8x8xf32> to vector<8x8xbf16>
    %c8_49 = arith.constant 8 : index
    %c0_50 = arith.constant 0 : index
    %78 = vector.load %arg11[%c8_49, %c0_50] : memref<32x32xbf16, #tpu.memory_space<vmem>>, vector<8x32xbf16>
    %cst_51 = arith.constant dense<0.000000e+00> : vector<8x32xf32>
    %79 = tpu.matmul %77, %78, %cst_51 {dimension_numbers = #tpu.dot_dimension_numbers<[1], [0], [0], [1], [0, 0, 1, 1], [], []>} : vector<8x8xbf16>, vector<8x32xbf16>, vector<8x32xf32> -> vector<8x32xf32>
    %80 = arith.addf %43, %79 : vector<8x32xf32>
    %c16 = arith.constant 16 : index
    %c0_52 = arith.constant 0 : index
    %81 = vector.load %arg5[%c16, %c0_52] : memref<32x32xbf16, #tpu.memory_space<vmem>>, vector<8x32xbf16>
    %cst_53 = arith.constant dense<0.000000e+00> : vector<8x8xf32>
    %82 = tpu.matmul %1, %81, %cst_53 {dimension_numbers = #tpu.dot_dimension_numbers<[1], [1], [0], [0], [0, 0, 1, 0], [], []>} : vector<8x32xbf16>, vector<8x32xbf16>, vector<8x8xf32> -> vector<8x8xf32>
    %c2 = arith.constant 2 : index
    %c0_54 = arith.constant 0 : index
    %83 = vector.load %arg6[%c2, %c0_54] : memref<4x8xf32, #tpu.memory_space<vmem>>, vector<1x8xf32>
    %84 = vector.broadcast %83 : vector<1x8xf32> to vector<8x8xf32>
    %85 = arith.addf %82, %84 : vector<8x8xf32>
    %cst_55 = arith.constant 0.353553385 : f32
    %86 = vector.broadcast %cst_55 : f32 to vector<8x8xf32>
    %87 = arith.mulf %85, %86 : vector<8x8xf32>
    %c16_56 = arith.constant 16 : index
    %c0_57 = arith.constant 0 : index
    %88 = vector.load %arg7[%c16_56, %c0_57] : memref<32x32xbf16, #tpu.memory_space<vmem>>, vector<8x32xbf16>
    %cst_58 = arith.constant dense<0.000000e+00> : vector<8x8xf32>
    %89 = tpu.matmul %3, %88, %cst_58 {dimension_numbers = #tpu.dot_dimension_numbers<[1], [1], [0], [0], [0, 0, 1, 0], [], []>} : vector<8x32xbf16>, vector<8x32xbf16>, vector<8x8xf32> -> vector<8x8xf32>
    %c2_59 = arith.constant 2 : index
    %c0_60 = arith.constant 0 : index
    %90 = vector.load %arg8[%c2_59, %c0_60] : memref<4x8xf32, #tpu.memory_space<vmem>>, vector<1x8xf32>
    %91 = vector.broadcast %90 : vector<1x8xf32> to vector<8x8xf32>
    %92 = arith.addf %89, %91 : vector<8x8xf32>
    %c16_61 = arith.constant 16 : index
    %c0_62 = arith.constant 0 : index
    %93 = vector.load %arg9[%c16_61, %c0_62] : memref<32x32xbf16, #tpu.memory_space<vmem>>, vector<8x32xbf16>
    %cst_63 = arith.constant dense<0.000000e+00> : vector<8x8xf32>
    %94 = tpu.matmul %5, %93, %cst_63 {dimension_numbers = #tpu.dot_dimension_numbers<[1], [1], [0], [0], [0, 0, 1, 0], [], []>} : vector<8x32xbf16>, vector<8x32xbf16>, vector<8x8xf32> -> vector<8x8xf32>
    %c2_64 = arith.constant 2 : index
    %c0_65 = arith.constant 0 : index
    %95 = vector.load %arg10[%c2_64, %c0_65] : memref<4x8xf32, #tpu.memory_space<vmem>>, vector<1x8xf32>
    %96 = vector.broadcast %95 : vector<1x8xf32> to vector<8x8xf32>
    %97 = arith.addf %94, %96 : vector<8x8xf32>
    %98 = arith.truncf %87 : vector<8x8xf32> to vector<8x8xbf16>
    %99 = arith.truncf %92 : vector<8x8xf32> to vector<8x8xbf16>
    %cst_66 = arith.constant dense<0.000000e+00> : vector<8x8xf32>
    %100 = tpu.matmul %98, %99, %cst_66 {dimension_numbers = #tpu.dot_dimension_numbers<[1], [1], [0], [0], [0, 0, 1, 0], [], []>} : vector<8x8xbf16>, vector<8x8xbf16>, vector<8x8xf32> -> vector<8x8xf32>
    %cst_67 = arith.constant dense<0xFF800000> : vector<8xf32>
    %101 = vector.multi_reduction <maximumf>, %100, %cst_67 [1] : vector<8x8xf32> to vector<8xf32>
    %102 = vector.shape_cast %101 : vector<8xf32> to vector<8x1xf32>
    %103 = vector.broadcast %102 : vector<8x1xf32> to vector<8x8xf32>
    %104 = arith.subf %100, %103 : vector<8x8xf32>
    %105 = math.exp %104 : vector<8x8xf32>
    %cst_68 = arith.constant dense<0.000000e+00> : vector<8xf32>
    %106 = vector.multi_reduction <add>, %105, %cst_68 [1] : vector<8x8xf32> to vector<8xf32>
    %107 = vector.shape_cast %106 : vector<8xf32> to vector<8x1xf32>
    %108 = tpu.reciprocal %107 {approx = true} : vector<8x1xf32> -> vector<8x1xf32>
    %109 = vector.broadcast %108 : vector<8x1xf32> to vector<8x8xf32>
    %110 = arith.mulf %105, %109 : vector<8x8xf32>
    %111 = arith.truncf %110 : vector<8x8xf32> to vector<8x8xbf16>
    %112 = arith.truncf %97 : vector<8x8xf32> to vector<8x8xbf16>
    %cst_69 = arith.constant dense<0.000000e+00> : vector<8x8xf32>
    %113 = tpu.matmul %111, %112, %cst_69 {dimension_numbers = #tpu.dot_dimension_numbers<[1], [0], [0], [1], [0, 0, 1, 1], [], []>} : vector<8x8xbf16>, vector<8x8xbf16>, vector<8x8xf32> -> vector<8x8xf32>
    %114 = arith.truncf %113 : vector<8x8xf32> to vector<8x8xbf16>
    %c16_70 = arith.constant 16 : index
    %c0_71 = arith.constant 0 : index
    %115 = vector.load %arg11[%c16_70, %c0_71] : memref<32x32xbf16, #tpu.memory_space<vmem>>, vector<8x32xbf16>
    %cst_72 = arith.constant dense<0.000000e+00> : vector<8x32xf32>
    %116 = tpu.matmul %114, %115, %cst_72 {dimension_numbers = #tpu.dot_dimension_numbers<[1], [0], [0], [1], [0, 0, 1, 1], [], []>} : vector<8x8xbf16>, vector<8x32xbf16>, vector<8x32xf32> -> vector<8x32xf32>
    %117 = arith.addf %80, %116 : vector<8x32xf32>
    %c24 = arith.constant 24 : index
    %c0_73 = arith.constant 0 : index
    %118 = vector.load %arg5[%c24, %c0_73] : memref<32x32xbf16, #tpu.memory_space<vmem>>, vector<8x32xbf16>
    %cst_74 = arith.constant dense<0.000000e+00> : vector<8x8xf32>
    %119 = tpu.matmul %1, %118, %cst_74 {dimension_numbers = #tpu.dot_dimension_numbers<[1], [1], [0], [0], [0, 0, 1, 0], [], []>} : vector<8x32xbf16>, vector<8x32xbf16>, vector<8x8xf32> -> vector<8x8xf32>
    %c3 = arith.constant 3 : index
    %c0_75 = arith.constant 0 : index
    %120 = vector.load %arg6[%c3, %c0_75] : memref<4x8xf32, #tpu.memory_space<vmem>>, vector<1x8xf32>
    %121 = vector.broadcast %120 : vector<1x8xf32> to vector<8x8xf32>
    %122 = arith.addf %119, %121 : vector<8x8xf32>
    %cst_76 = arith.constant 0.353553385 : f32
    %123 = vector.broadcast %cst_76 : f32 to vector<8x8xf32>
    %124 = arith.mulf %122, %123 : vector<8x8xf32>
    %c24_77 = arith.constant 24 : index
    %c0_78 = arith.constant 0 : index
    %125 = vector.load %arg7[%c24_77, %c0_78] : memref<32x32xbf16, #tpu.memory_space<vmem>>, vector<8x32xbf16>
    %cst_79 = arith.constant dense<0.000000e+00> : vector<8x8xf32>
    %126 = tpu.matmul %3, %125, %cst_79 {dimension_numbers = #tpu.dot_dimension_numbers<[1], [1], [0], [0], [0, 0, 1, 0], [], []>} : vector<8x32xbf16>, vector<8x32xbf16>, vector<8x8xf32> -> vector<8x8xf32>
    %c3_80 = arith.constant 3 : index
    %c0_81 = arith.constant 0 : index
    %127 = vector.load %arg8[%c3_80, %c0_81] : memref<4x8xf32, #tpu.memory_space<vmem>>, vector<1x8xf32>
    %128 = vector.broadcast %127 : vector<1x8xf32> to vector<8x8xf32>
    %129 = arith.addf %126, %128 : vector<8x8xf32>
    %c24_82 = arith.constant 24 : index
    %c0_83 = arith.constant 0 : index
    %130 = vector.load %arg9[%c24_82, %c0_83] : memref<32x32xbf16, #tpu.memory_space<vmem>>, vector<8x32xbf16>
    %cst_84 = arith.constant dense<0.000000e+00> : vector<8x8xf32>
    %131 = tpu.matmul %5, %130, %cst_84 {dimension_numbers = #tpu.dot_dimension_numbers<[1], [1], [0], [0], [0, 0, 1, 0], [], []>} : vector<8x32xbf16>, vector<8x32xbf16>, vector<8x8xf32> -> vector<8x8xf32>
    %c3_85 = arith.constant 3 : index
    %c0_86 = arith.constant 0 : index
    %132 = vector.load %arg10[%c3_85, %c0_86] : memref<4x8xf32, #tpu.memory_space<vmem>>, vector<1x8xf32>
    %133 = vector.broadcast %132 : vector<1x8xf32> to vector<8x8xf32>
    %134 = arith.addf %131, %133 : vector<8x8xf32>
    %135 = arith.truncf %124 : vector<8x8xf32> to vector<8x8xbf16>
    %136 = arith.truncf %129 : vector<8x8xf32> to vector<8x8xbf16>
    %cst_87 = arith.constant dense<0.000000e+00> : vector<8x8xf32>
    %137 = tpu.matmul %135, %136, %cst_87 {dimension_numbers = #tpu.dot_dimension_numbers<[1], [1], [0], [0], [0, 0, 1, 0], [], []>} : vector<8x8xbf16>, vector<8x8xbf16>, vector<8x8xf32> -> vector<8x8xf32>
    %cst_88 = arith.constant dense<0xFF800000> : vector<8xf32>
    %138 = vector.multi_reduction <maximumf>, %137, %cst_88 [1] : vector<8x8xf32> to vector<8xf32>
    %139 = vector.shape_cast %138 : vector<8xf32> to vector<8x1xf32>
    %140 = vector.broadcast %139 : vector<8x1xf32> to vector<8x8xf32>
    %141 = arith.subf %137, %140 : vector<8x8xf32>
    %142 = math.exp %141 : vector<8x8xf32>
    %cst_89 = arith.constant dense<0.000000e+00> : vector<8xf32>
    %143 = vector.multi_reduction <add>, %142, %cst_89 [1] : vector<8x8xf32> to vector<8xf32>
    %144 = vector.shape_cast %143 : vector<8xf32> to vector<8x1xf32>
    %145 = tpu.reciprocal %144 {approx = true} : vector<8x1xf32> -> vector<8x1xf32>
    %146 = vector.broadcast %145 : vector<8x1xf32> to vector<8x8xf32>
    %147 = arith.mulf %142, %146 : vector<8x8xf32>
    %148 = arith.truncf %147 : vector<8x8xf32> to vector<8x8xbf16>
    %149 = arith.truncf %134 : vector<8x8xf32> to vector<8x8xbf16>
    %cst_90 = arith.constant dense<0.000000e+00> : vector<8x8xf32>
    %150 = tpu.matmul %148, %149, %cst_90 {dimension_numbers = #tpu.dot_dimension_numbers<[1], [0], [0], [1], [0, 0, 1, 1], [], []>} : vector<8x8xbf16>, vector<8x8xbf16>, vector<8x8xf32> -> vector<8x8xf32>
    %151 = arith.truncf %150 : vector<8x8xf32> to vector<8x8xbf16>
    %c24_91 = arith.constant 24 : index
    %c0_92 = arith.constant 0 : index
    %152 = vector.load %arg11[%c24_91, %c0_92] : memref<32x32xbf16, #tpu.memory_space<vmem>>, vector<8x32xbf16>
    %cst_93 = arith.constant dense<0.000000e+00> : vector<8x32xf32>
    %153 = tpu.matmul %151, %152, %cst_93 {dimension_numbers = #tpu.dot_dimension_numbers<[1], [0], [0], [1], [0, 0, 1, 1], [], []>} : vector<8x8xbf16>, vector<8x32xbf16>, vector<8x32xf32> -> vector<8x32xf32>
    %154 = arith.addf %117, %153 : vector<8x32xf32>
    %c0_94 = arith.constant 0 : index
    %c0_95 = arith.constant 0 : index
    %155 = vector.load %arg12[%c0_94, %c0_95] : memref<1x32xf32, #tpu.memory_space<vmem>>, vector<1x32xf32>
    %156 = vector.broadcast %155 : vector<1x32xf32> to vector<8x32xf32>
    %157 = arith.addf %154, %156 : vector<8x32xf32>
    %c0_96 = arith.constant 0 : index
    %c0_97 = arith.constant 0 : index
    %c0_98 = arith.constant 0 : index
    %158 = vector.load %arg13[%c0_96, %c0_97, %c0_98] : memref<1x8x32xf32, #tpu.memory_space<vmem>>, vector<1x8x32xf32>
    %159 = vector.shape_cast %158 : vector<1x8x32xf32> to vector<8x32xf32>
    %160 = vector.shape_cast %157 : vector<8x32xf32> to vector<1x8x32xf32>
    tpu.vector_store %arg13[%c0_96, %c0_97, %c0_98], %160 {strides = array<i32>} : memref<1x8x32xf32, #tpu.memory_space<vmem>>, vector<1x8x32xf32>,
    return
  }
  func.func @transform_0(%arg0: i32, %arg1: i32) -> (i32, i32, i32) {
    %c0_i32 = arith.constant 0 : i32
    %c0_i32_0 = arith.constant 0 : i32
    return %arg0, %arg1, %c0_i32 : i32, i32, i32
  }
  func.func @transform_1(%arg0: i32, %arg1: i32) -> (i32, i32, i32) {
    %c0_i32 = arith.constant 0 : i32
    %c0_i32_0 = arith.constant 0 : i32
    %c0_i32_1 = arith.constant 0 : i32
    return %arg0, %c0_i32, %c0_i32_0 : i32, i32, i32
  }
  func.func @transform_2(%arg0: i32, %arg1: i32) -> (i32, i32, i32) {
    %c0_i32 = arith.constant 0 : i32
    %c0_i32_0 = arith.constant 0 : i32
    %c0_i32_1 = arith.constant 0 : i32
    return %arg0, %c0_i32, %c0_i32_0 : i32, i32, i32
  }
  func.func @transform_3(%arg0: i32, %arg1: i32) -> (i32, i32) {
    %c0_i32 = arith.constant 0 : i32
    %c0_i32_0 = arith.constant 0 : i32
    %c0_i32_1 = arith.constant 0 : i32
    return %c0_i32, %c0_i32_0 : i32, i32
  }
  func.func @transform_4(%arg0: i32, %arg1: i32) -> (i32, i32) {
    %c0_i32 = arith.constant 0 : i32
    %c0_i32_0 = arith.constant 0 : i32
    %c0_i32_1 = arith.constant 0 : i32
    return %c0_i32, %c0_i32_0 : i32, i32
  }
  func.func @transform_5(%arg0: i32, %arg1: i32) -> (i32, i32) {
    %c0_i32 = arith.constant 0 : i32
    %c0_i32_0 = arith.constant 0 : i32
    %c0_i32_1 = arith.constant 0 : i32
    return %c0_i32, %c0_i32_0 : i32, i32
  }
  func.func @transform_6(%arg0: i32, %arg1: i32) -> (i32, i32) {
    %c0_i32 = arith.constant 0 : i32
    %c0_i32_0 = arith.constant 0 : i32
    %c0_i32_1 = arith.constant 0 : i32
    return %c0_i32, %c0_i32_0 : i32, i32
  }
  func.func @transform_7(%arg0: i32, %arg1: i32) -> (i32, i32) {
    %c0_i32 = arith.constant 0 : i32
    %c0_i32_0 = arith.constant 0 : i32
    %c0_i32_1 = arith.constant 0 : i32
    return %c0_i32, %c0_i32_0 : i32, i32
  }
  func.func @transform_8(%arg0: i32, %arg1: i32) -> (i32, i32) {
    %c0_i32 = arith.constant 0 : i32
    %c0_i32_0 = arith.constant 0 : i32
    %c0_i32_1 = arith.constant 0 : i32
    return %c0_i32, %c0_i32_0 : i32, i32
  }
  func.func @transform_9(%arg0: i32, %arg1: i32) -> (i32, i32) {
    %c0_i32 = arith.constant 0 : i32
    %c0_i32_0 = arith.constant 0 : i32
    %c0_i32_1 = arith.constant 0 : i32
    return %c0_i32, %c0_i32_0 : i32, i32
  }
  func.func @transform_10(%arg0: i32, %arg1: i32) -> (i32, i32) {
    %c0_i32 = arith.constant 0 : i32
    %c0_i32_0 = arith.constant 0 : i32
    %c0_i32_1 = arith.constant 0 : i32
    return %c0_i32, %c0_i32_0 : i32, i32
  }
  func.func @transform_11(%arg0: i32, %arg1: i32) -> (i32, i32, i32) {
    %c0_i32 = arith.constant 0 : i32
    %c0_i32_0 = arith.constant 0 : i32
    return %arg0, %arg1, %c0_i32 : i32, i32, i32
  }
}

</mosaic_0001>

<llo_original>
// kernel: tpu_custom_call.1
$region0: #{tpu_custom_call.1}
  #allocation0 [shape = 'u32[]', space=smem, size = 0x4, offset = 0x4, fixed_abs, tag = 'smem constant byte address 0x4 - core index']
  #allocation1 [shape = 'u32[144,128]{1,0:T(1,128)}', space=vmem, size = 0x12000, scoped, tag = 'internal scratch']
  %s0 = inlined_call_operand.hbm [shape: bf16[2,8,32], index: 0, kind: input, shape index: {}]
  %s1 = inlined_call_operand.hbm [shape: bf16[2,8,32], index: 1, kind: input, shape index: {}]
  %s2 = inlined_call_operand.hbm [shape: bf16[2,8,32], index: 2, kind: input, shape index: {}]
  %s3 = inlined_call_operand.hbm [shape: bf16[32,32], index: 3, kind: input, shape index: {}]
  %s4 = inlined_call_operand.hbm [shape: f32[4,8], index: 4, kind: input, shape index: {}]
  %s5 = inlined_call_operand.hbm [shape: bf16[32,32], index: 5, kind: input, shape index: {}]
  %s6 = inlined_call_operand.hbm [shape: f32[4,8], index: 6, kind: input, shape index: {}]
  %s7 = inlined_call_operand.hbm [shape: bf16[32,32], index: 7, kind: input, shape index: {}]
  %s8 = inlined_call_operand.hbm [shape: f32[4,8], index: 8, kind: input, shape index: {}]
  %s9 = inlined_call_operand.vmem [shape: bf16[32,32], index: 9, kind: input, shape index: {}]
  %s10 = inlined_call_operand.vmem [shape: f32[1,32], index: 10, kind: input, shape index: {}]
  %s11 = inlined_call_operand.hbm [shape: f32[2,8,32], index: 11, kind: output, shape index: {}]
  %s12 = sld [smem:[#allocation0]]
  $region113: #{tpu_custom_call.1} parent=0
    _
  %s14 = ssub.s32 1, %s12
  %s15 = scalar_select 0, %s14, %s12
  $region1: #{tpu_custom_call.1} parent=0
    #allocation2 [shape = 'u8[4096]{0}', space=vmem, size = 0x1000, scoped, tag = 'input window, operand 0']
    #allocation3 [shape = 's32[2]{0}', space=sflag, size = 0x8, scoped, tag = 'scoped memory for tpu_custom_call.1']
    #allocation4 [shape = 's32[2]{0}', space=sflag, size = 0x8, scoped, tag = 'scoped memory for tpu_custom_call.1']
    #allocation5 [shape = 'u8[4096]{0}', space=vmem, size = 0x1000, scoped, tag = 'input window, operand 1']
    #allocation6 [shape = 's32[2]{0}', space=sflag, size = 0x8, scoped, tag = 'scoped memory for tpu_custom_call.1']
    #allocation7 [shape = 'u8[4096]{0}', space=vmem, size = 0x1000, scoped, tag = 'input window, operand 2']
    #allocation8 [shape = 'u8[8192]{0}', space=vmem, size = 0x2000, scoped, tag = 'input window, operand 3, single buffered']
    #allocation9 [shape = 's32[1]{0}', space=sflag, size = 0x4, scoped, tag = 'scoped memory for tpu_custom_call.1']
    #allocation10 [shape = 'u8[2048]{0}', space=vmem, size = 0x800, scoped, tag = 'input window, operand 4, single buffered']
    #allocation11 [shape = 'u8[8192]{0}', space=vmem, size = 0x2000, scoped, tag = 'input window, operand 5, single buffered']
    #allocation12 [shape = 's32[1]{0}', space=sflag, size = 0x4, scoped, tag = 'scoped memory for tpu_custom_call.1']
    #allocation13 [shape = 'u8[2048]{0}', space=vmem, size = 0x800, scoped, tag = 'input window, operand 6, single buffered']
    #allocation14 [shape = 'u8[8192]{0}', space=vmem, size = 0x2000, scoped, tag = 'input window, operand 7, single buffered']
    #allocation15 [shape = 's32[1]{0}', space=sflag, size = 0x4, scoped, tag = 'scoped memory for tpu_custom_call.1']
    #allocation16 [shape = 'u8[2048]{0}', space=vmem, size = 0x800, scoped, tag = 'input window, operand 8, single buffered']
    #allocation17 [shape = 'u8[8192]{0}', space=vmem, size = 0x2000, scoped, tag = 'output window, operand 0']
    %16 = vsyncpa [#allocation3], 0
    %s17 = scalar_lea.sflag [#allocation3], 1
    %18 = vsyncpa %s17, 0
    %19 = vsyncpa [#allocation6], 0
    %s20 = scalar_lea.sflag [#allocation6], 1
    %21 = vsyncpa %s20, 0
    %22 = vsyncpa [#allocation9], 0
    %23 = vsyncpa [#allocation12], 0
    %24 = vsyncpa [#allocation15], 0
    %25 = vsyncpa [#allocation4], 0
    %s26 = scalar_lea.sflag [#allocation4], 1
    %27 = vsyncpa %s26, 0
    loop: start=0, step=1, limit=4
    $region2: #{tpu_custom_call.1} parent=1 // loop_pre_header
      _
    $region3: #{tpu_custom_call.1} parent=1 // loop_header
      %s29 = sphi 0, %s33
      %p30 = scmp.ge.s32.totalorder %s29, 4
      %s36 = sphi 0, %s48
      %s37 = sphi 0, %s44
      %s38 = sphi 0, %s36
      %s39 = sphi 0, %s37
      %s40 = sphi 0, %s38
      %s41 = sphi 0, %s39
      %s53 = sphi 0, %s55
      %s56 = sphi 0, %s53
      %s57 = sphi 0, %s56
      %s73 = sphi 0, %s57
      %s79 = sphi 0, %s81
      %s82 = sphi 0, %s79
      %s83 = sphi 0, %s82
      %s99 = sphi 0, %s83
      %s105 = sphi 0, %s107
      %s108 = sphi 0, %s105
      %s109 = sphi 0, %s108
      %s125 = sphi 0, %s109
      %s129 = sphi 0, %s129
      %s131 = sphi 0, %s129
      %s132 = sphi 0, %s131
      %s146 = sphi 0, %s132
      %s150 = sphi 0, %s150
      %s152 = sphi 0, %s150
      %s153 = sphi 0, %s152
      %s167 = sphi 0, %s153
      %s171 = sphi 0, %s171
      %s173 = sphi 0, %s171
      %s174 = sphi 0, %s173
      %s188 = sphi 0, %s174
      %s192 = sphi 0, %s192
      %s194 = sphi 0, %s192
      %s195 = sphi 0, %s194
      %s209 = sphi 0, %s195
      %s213 = sphi 0, %s213
      %s215 = sphi 0, %s213
      %s216 = sphi 0, %s215
      %s230 = sphi 0, %s216
      %s234 = sphi 0, %s234
      %s236 = sphi 0, %s234
      %s237 = sphi 0, %s236
      %s251 = sphi 0, %s237
      %s255 = sphi 0, %s255
      %s257 = sphi 0, %s255
      %s258 = sphi 0, %s257
      %s272 = sphi 0, %s258
      %s276 = sphi 0, %s276
      %s278 = sphi 0, %s276
      %s279 = sphi 0, %s278
      %s293 = sphi 0, %s279
      %s301 = sphi 0, %s303
      %s304 = sphi 0, %s301
      %s305 = sphi 0, %s304
      %s321 = sphi 0, %s305
    $region4: #{tpu_custom_call.1} parent=1 // loop_header_branch
      %32 = sbr.rel (%p30) target = $region8
    $region5: #{tpu_custom_call.1} parent=1 // loop_body
      %s34 = ssub.s32 %s29, 1
      %s35 = ssub.s32 %s29, 2
      %s42 = sadd.s32 1, %s37
      %p43 = scmp.ge.s32.totalorder %s42, 1
      %s44 = scalar_select %p43, 0, %s42
      %s45 = sadd.s32 1, %s36
      %s46 = scalar_select %p43, %s45, %s36
      %p47 = scmp.ge.s32.totalorder %s46, 2
      %s48 = scalar_select %p47, 0, %s46
      %s49 = ssub.s32 %s36, %s48
      %s50 = ssub.s32 %s37, %s44
      %s51 = sor.u32 %s49, %s50
      %p52 = scmp.eq.s32.totalorder %s51, 0
      %s54 = sadd.s32 %s53, 1
      %s55 = scalar_select %p52, %s53, %s54
      %p58 = pneg %p52
      %p59 = scmp.eq.s32.totalorder %s29, 1
      %p60 = por %p58, %p59
      %p61 = scmp.ne.s32.totalorder %s53, %s56
      %p62 = scmp.eq.s32.totalorder %s29, 0
      %p63 = por %p61, %p62
      %p64 = scmp.ne.s32.totalorder %s53, %s56
      %p65 = scmp.eq.s32.totalorder %s34, 1
      %p66 = por %p64, %p65
      %p67 = scmp.ne.s32.totalorder %s56, %s57
      %p68 = scmp.eq.s32.totalorder %s34, 0
      %p69 = por %p67, %p68
      %p70 = scmp.ne.s32.totalorder %s56, %s57
      %p71 = scmp.eq.s32.totalorder %s35, 1
      %p72 = por %p70, %p71
      %p74 = scmp.ne.s32.totalorder %s57, %s73
      %p75 = scmp.eq.s32.totalorder %s35, 0
      %p76 = por %p74, %p75
      %s77 = ssub.s32 %s36, %s48
      %p78 = scmp.eq.s32.totalorder %s77, 0
      %s80 = sadd.s32 %s79, 1
      %s81 = scalar_select %p78, %s79, %s80
      %p84 = pneg %p78
      %p85 = scmp.eq.s32.totalorder %s29, 1
      %p86 = por %p84, %p85
      %p87 = scmp.ne.s32.totalorder %s79, %s82
      %p88 = scmp.eq.s32.totalorder %s29, 0
      %p89 = por %p87, %p88
      %p90 = scmp.ne.s32.totalorder %s79, %s82
      %p91 = scmp.eq.s32.totalorder %s34, 1
      %p92 = por %p90, %p91
      %p93 = scmp.ne.s32.totalorder %s82, %s83
      %p94 = scmp.eq.s32.totalorder %s34, 0
      %p95 = por %p93, %p94
      %p96 = scmp.ne.s32.totalorder %s82, %s83
      %p97 = scmp.eq.s32.totalorder %s35, 1
      %p98 = por %p96, %p97
      %p100 = scmp.ne.s32.totalorder %s83, %s99
      %p101 = scmp.eq.s32.totalorder %s35, 0
      %p102 = por %p100, %p101
      %s103 = ssub.s32 %s36, %s48
      %p104 = scmp.eq.s32.totalorder %s103, 0
      %s106 = sadd.s32 %s105, 1
      %s107 = scalar_select %p104, %s105, %s106
      %p110 = pneg %p104
      %p111 = scmp.eq.s32.totalorder %s29, 1
      %p112 = por %p110, %p111
      %p113 = scmp.ne.s32.totalorder %s105, %s108
      %p114 = scmp.eq.s32.totalorder %s29, 0
      %p115 = por %p113, %p114
      %p116 = scmp.ne.s32.totalorder %s105, %s108
      %p117 = scmp.eq.s32.totalorder %s34, 1
      %p118 = por %p116, %p117
      %p119 = scmp.ne.s32.totalorder %s108, %s109
      %p120 = scmp.eq.s32.totalorder %s34, 0
      %p121 = por %p119, %p120
      %p122 = scmp.ne.s32.totalorder %s108, %s109
      %p123 = scmp.eq.s32.totalorder %s35, 1
      %p124 = por %p122, %p123
      %p126 = scmp.ne.s32.totalorder %s109, %s125
      %p127 = scmp.eq.s32.totalorder %s35, 0
      %p128 = por %p126, %p127
      %s130 = sadd.s32 %s129, 1
      %p133 = scmp.eq.s32.totalorder %s29, 1
      %p134 = scmp.ne.s32.totalorder %s129, %s131
      %p135 = scmp.eq.s32.totalorder %s29, 0
      %p136 = por %p134, %p135
      %p137 = scmp.ne.s32.totalorder %s129, %s131
      %p138 = scmp.eq.s32.totalorder %s34, 1
      %p139 = por %p137, %p138
      %p140 = scmp.ne.s32.totalorder %s131, %s132
      %p141 = scmp.eq.s32.totalorder %s34, 0
      %p142 = por %p140, %p141
      %p143 = scmp.ne.s32.totalorder %s131, %s132
      %p144 = scmp.eq.s32.totalorder %s35, 1
      %p145 = por %p143, %p144
      %p147 = scmp.ne.s32.totalorder %s132, %s146
      %p148 = scmp.eq.s32.totalorder %s35, 0
      %p149 = por %p147, %p148
      %s151 = sadd.s32 %s150, 1
      %p154 = scmp.eq.s32.totalorder %s29, 1
      %p155 = scmp.ne.s32.totalorder %s150, %s152
      %p156 = scmp.eq.s32.totalorder %s29, 0
      %p157 = por %p155, %p156
      %p158 = scmp.ne.s32.totalorder %s150, %s152
      %p159 = scmp.eq.s32.totalorder %s34, 1
      %p160 = por %p158, %p159
      %p161 = scmp.ne.s32.totalorder %s152, %s153
      %p162 = scmp.eq.s32.totalorder %s34, 0
      %p163 = por %p161, %p162
      %p164 = scmp.ne.s32.totalorder %s152, %s153
      %p165 = scmp.eq.s32.totalorder %s35, 1
      %p166 = por %p164, %p165
      %p168 = scmp.ne.s32.totalorder %s153, %s167
      %p169 = scmp.eq.s32.totalorder %s35, 0
      %p170 = por %p168, %p169
      %s172 = sadd.s32 %s171, 1
      %p175 = scmp.eq.s32.totalorder %s29, 1
      %p176 = scmp.ne.s32.totalorder %s171, %s173
      %p177 = scmp.eq.s32.totalorder %s29, 0
      %p178 = por %p176, %p177
      %p179 = scmp.ne.s32.totalorder %s171, %s173
      %p180 = scmp.eq.s32.totalorder %s34, 1
      %p181 = por %p179, %p180
      %p182 = scmp.ne.s32.totalorder %s173, %s174
      %p183 = scmp.eq.s32.totalorder %s34, 0
      %p184 = por %p182, %p183
      %p185 = scmp.ne.s32.totalorder %s173, %s174
      %p186 = scmp.eq.s32.totalorder %s35, 1
      %p187 = por %p185, %p186
      %p189 = scmp.ne.s32.totalorder %s174, %s188
      %p190 = scmp.eq.s32.totalorder %s35, 0
      %p191 = por %p189, %p190
      %s193 = sadd.s32 %s192, 1
      %p196 = scmp.eq.s32.totalorder %s29, 1
      %p197 = scmp.ne.s32.totalorder %s192, %s194
      %p198 = scmp.eq.s32.totalorder %s29, 0
      %p199 = por %p197, %p198
      %p200 = scmp.ne.s32.totalorder %s192, %s194
      %p201 = scmp.eq.s32.totalorder %s34, 1
      %p202 = por %p200, %p201
      %p203 = scmp.ne.s32.totalorder %s194, %s195
      %p204 = scmp.eq.s32.totalorder %s34, 0
      %p205 = por %p203, %p204
      %p206 = scmp.ne.s32.totalorder %s194, %s195
      %p207 = scmp.eq.s32.totalorder %s35, 1
      %p208 = por %p206, %p207
      %p210 = scmp.ne.s32.totalorder %s195, %s209
      %p211 = scmp.eq.s32.totalorder %s35, 0
      %p212 = por %p210, %p211
      %s214 = sadd.s32 %s213, 1
      %p217 = scmp.eq.s32.totalorder %s29, 1
      %p218 = scmp.ne.s32.totalorder %s213, %s215
      %p219 = scmp.eq.s32.totalorder %s29, 0
      %p220 = por %p218, %p219
      %p221 = scmp.ne.s32.totalorder %s213, %s215
      %p222 = scmp.eq.s32.totalorder %s34, 1
      %p223 = por %p221, %p222
      %p224 = scmp.ne.s32.totalorder %s215, %s216
      %p225 = scmp.eq.s32.totalorder %s34, 0
      %p226 = por %p224, %p225
      %p227 = scmp.ne.s32.totalorder %s215, %s216
      %p228 = scmp.eq.s32.totalorder %s35, 1
      %p229 = por %p227, %p228
      %p231 = scmp.ne.s32.totalorder %s216, %s230
      %p232 = scmp.eq.s32.totalorder %s35, 0
      %p233 = por %p231, %p232
      %s235 = sadd.s32 %s234, 1
      %p238 = scmp.eq.s32.totalorder %s29, 1
      %p239 = scmp.ne.s32.totalorder %s234, %s236
      %p240 = scmp.eq.s32.totalorder %s29, 0
      %p241 = por %p239, %p240
      %p242 = scmp.ne.s32.totalorder %s234, %s236
      %p243 = scmp.eq.s32.totalorder %s34, 1
      %p244 = por %p242, %p243
      %p245 = scmp.ne.s32.totalorder %s236, %s237
      %p246 = scmp.eq.s32.totalorder %s34, 0
      %p247 = por %p245, %p246
      %p248 = scmp.ne.s32.totalorder %s236, %s237
      %p249 = scmp.eq.s32.totalorder %s35, 1
      %p250 = por %p248, %p249
      %p252 = scmp.ne.s32.totalorder %s237, %s251
      %p253 = scmp.eq.s32.totalorder %s35, 0
      %p254 = por %p252, %p253
      %s256 = sadd.s32 %s255, 1
      %p259 = scmp.eq.s32.totalorder %s29, 1
      %p260 = scmp.ne.s32.totalorder %s255, %s257
      %p261 = scmp.eq.s32.totalorder %s29, 0
      %p262 = por %p260, %p261
      %p263 = scmp.ne.s32.totalorder %s255, %s257
      %p264 = scmp.eq.s32.totalorder %s34, 1
      %p265 = por %p263, %p264
      %p266 = scmp.ne.s32.totalorder %s257, %s258
      %p267 = scmp.eq.s32.totalorder %s34, 0
      %p268 = por %p266, %p267
      %p269 = scmp.ne.s32.totalorder %s257, %s258
      %p270 = scmp.eq.s32.totalorder %s35, 1
      %p271 = por %p269, %p270
      %p273 = scmp.ne.s32.totalorder %s258, %s272
      %p274 = scmp.eq.s32.totalorder %s35, 0
      %p275 = por %p273, %p274
      %s277 = sadd.s32 %s276, 1
      %p280 = scmp.eq.s32.totalorder %s29, 1
      %p281 = scmp.ne.s32.totalorder %s276, %s278
      %p282 = scmp.eq.s32.totalorder %s29, 0
      %p283 = por %p281, %p282
      %p284 = scmp.ne.s32.totalorder %s276, %s278
      %p285 = scmp.eq.s32.totalorder %s34, 1
      %p286 = por %p284, %p285
      %p287 = scmp.ne.s32.totalorder %s278, %s279
      %p288 = scmp.eq.s32.totalorder %s34, 0
      %p289 = por %p287, %p288
      %p290 = scmp.ne.s32.totalorder %s278, %s279
      %p291 = scmp.eq.s32.totalorder %s35, 1
      %p292 = por %p290, %p291
      %p294 = scmp.ne.s32.totalorder %s279, %s293
      %p295 = scmp.eq.s32.totalorder %s35, 0
      %p296 = por %p294, %p295
      %s297 = ssub.s32 %s36, %s48
      %s298 = ssub.s32 %s37, %s44
      %s299 = sor.u32 %s297, %s298
      %p300 = scmp.eq.s32.totalorder %s299, 0
      %s302 = sadd.s32 %s301, 1
      %s303 = scalar_select %p300, %s301, %s302
      %p306 = pneg %p300
      %p307 = scmp.eq.s32.totalorder %s29, 1
      %p308 = por %p306, %p307
      %p309 = scmp.ne.s32.totalorder %s301, %s304
      %p310 = scmp.eq.s32.totalorder %s29, 0
      %p311 = por %p309, %p310
      %p312 = scmp.ne.s32.totalorder %s301, %s304
      %p313 = scmp.eq.s32.totalorder %s34, 1
      %p314 = por %p312, %p313
      %p315 = scmp.ne.s32.totalorder %s304, %s305
      %p316 = scmp.eq.s32.totalorder %s34, 0
      %p317 = por %p315, %p316
      %p318 = scmp.ne.s32.totalorder %s304, %s305
      %p319 = scmp.eq.s32.totalorder %s35, 1
      %p320 = por %p318, %p319
      %p322 = scmp.ne.s32.totalorder %s305, %s321
      %p323 = scmp.eq.s32.totalorder %s35, 0
      %p324 = por %p322, %p323
      %p325 = scmp.le.s32.totalorder 1, %s29
      %p326 = scmp.lt.s32.totalorder %s29, 3
      %p327 = pnand %p325, %p326
      %p328 = pneg %p327
      // Predicated region
      $region9: #{tpu_custom_call.1} parent=5 // pred_check
        _
      $region10: #{tpu_custom_call.1} parent=5 // pred_check_branch
        %330 = sbr.rel (%p327) target = $region12
      $region11: #{tpu_custom_call.1} parent=5 // pred_region
        %s331 = ssub.s32 %s29, 1
        // Predicated region
        $region13: #{tpu_custom_call.1} parent=11 // pred_check
          %p332 = pneg %p142
        $region14: #{tpu_custom_call.1} parent=11 // pred_check_branch
          %334 = sbr.rel (%p332) target = $region16
        $region15: #{tpu_custom_call.1} parent=11 // pred_region
          %s336 = ssub.s32 256, 256
          %337 = vsyncadd [#allocation9], %s336
          %s338 = sshll.u32 [#allocation8], 4
          %s339 = int_to_ptr.vmem [resolvable:$true] %s338
          %344 = dma.hbm_to_vmem [thread:$0]  %s3, 256, %s339, [#allocation9], 64, 64, 4
        $region16: #{tpu_custom_call.1} parent=11 // pred_fallthru
          _
        // Predicated region
        $region17: #{tpu_custom_call.1} parent=11 // pred_check
          %p345 = pneg %p163
        $region18: #{tpu_custom_call.1} parent=11 // pred_check_branch
          %347 = sbr.rel (%p345) target = $region20
        $region19: #{tpu_custom_call.1} parent=11 // pred_region
          %s349 = ssub.s32 64, 64
          %350 = vsyncadd [#allocation9], %s349
          %s352 = sshll.u32 [#allocation10], 4
          %s353 = int_to_ptr.vmem [resolvable:$true] %s352
          %355 = dma.hbm_to_vmem [thread:$0]  %s4, 64, %s353, [#allocation9]
        $region20: #{tpu_custom_call.1} parent=11 // pred_fallthru
          _
        // Predicated region
        $region21: #{tpu_custom_call.1} parent=11 // pred_check
          %p356 = pneg %p184
        $region22: #{tpu_custom_call.1} parent=11 // pred_check_branch
          %358 = sbr.rel (%p356) target = $region24
        $region23: #{tpu_custom_call.1} parent=11 // pred_region
          %s360 = ssub.s32 256, 256
          %361 = vsyncadd [#allocation12], %s360
          %s362 = sshll.u32 [#allocation11], 4
          %s363 = int_to_ptr.vmem [resolvable:$true] %s362
          %368 = dma.hbm_to_vmem [thread:$0]  %s5, 256, %s363, [#allocation12], 64, 64, 4
        $region24: #{tpu_custom_call.1} parent=11 // pred_fallthru
          _
        // Predicated region
        $region25: #{tpu_custom_call.1} parent=11 // pred_check
          %p369 = pneg %p205
        $region26: #{tpu_custom_call.1} parent=11 // pred_check_branch
          %371 = sbr.rel (%p369) target = $region28
        $region27: #{tpu_custom_call.1} parent=11 // pred_region
          %s373 = ssub.s32 64, 64
          %374 = vsyncadd [#allocation12], %s373
          %s376 = sshll.u32 [#allocation13], 4
          %s377 = int_to_ptr.vmem [resolvable:$true] %s376
          %379 = dma.hbm_to_vmem [thread:$0]  %s6, 64, %s377, [#allocation12]
        $region28: #{tpu_custom_call.1} parent=11 // pred_fallthru
          _
        // Predicated region
        $region29: #{tpu_custom_call.1} parent=11 // pred_check
          %p380 = pneg %p226
        $region30: #{tpu_custom_call.1} parent=11 // pred_check_branch
          %382 = sbr.rel (%p380) target = $region32
        $region31: #{tpu_custom_call.1} parent=11 // pred_region
          %s384 = ssub.s32 256, 256
          %385 = vsyncadd [#allocation15], %s384
          %s386 = sshll.u32 [#allocation14], 4
          %s387 = int_to_ptr.vmem [resolvable:$true] %s386
          %392 = dma.hbm_to_vmem [thread:$0]  %s7, 256, %s387, [#allocation15], 64, 64, 4
        $region32: #{tpu_custom_call.1} parent=11 // pred_fallthru
          _
        // Predicated region
        $region33: #{tpu_custom_call.1} parent=11 // pred_check
          %p393 = pneg %p247
        $region34: #{tpu_custom_call.1} parent=11 // pred_check_branch
          %395 = sbr.rel (%p393) target = $region36
        $region35: #{tpu_custom_call.1} parent=11 // pred_region
          %s397 = ssub.s32 64, 64
          %398 = vsyncadd [#allocation15], %s397
          %s400 = sshll.u32 [#allocation16], 4
          %s401 = int_to_ptr.vmem [resolvable:$true] %s400
          %403 = dma.hbm_to_vmem [thread:$0]  %s8, 64, %s401, [#allocation15]
        $region36: #{tpu_custom_call.1} parent=11 // pred_fallthru
          _
        // Predicated region
        $region37: #{tpu_custom_call.1} parent=11 // pred_check
          %p404 = pneg %p268
        $region38: #{tpu_custom_call.1} parent=11 // pred_check_branch
          %406 = sbr.rel (%p404) target = $region40
        $region39: #{tpu_custom_call.1} parent=11 // pred_region
          _
        $region40: #{tpu_custom_call.1} parent=11 // pred_fallthru
          _
        // Predicated region
        $region41: #{tpu_custom_call.1} parent=11 // pred_check
          %p407 = pneg %p289
        $region42: #{tpu_custom_call.1} parent=11 // pred_check_branch
          %409 = sbr.rel (%p407) target = $region44
        $region43: #{tpu_custom_call.1} parent=11 // pred_region
          _
        $region44: #{tpu_custom_call.1} parent=11 // pred_fallthru
          _
      $region12: #{tpu_custom_call.1} parent=5 // pred_fallthru
        _
      %p410 = scmp.lt.s32.totalorder %s29, 2
      // Predicated region
      $region45: #{tpu_custom_call.1} parent=5 // pred_check
        %p411 = pneg %p410
      $region46: #{tpu_custom_call.1} parent=5 // pred_check_branch
        %413 = sbr.rel (%p411) target = $region48
      $region47: #{tpu_custom_call.1} parent=5 // pred_region
        // Predicated region
        $region49: #{tpu_custom_call.1} parent=47 // pred_check
          %p414 = pneg %p63
        $region50: #{tpu_custom_call.1} parent=47 // pred_check_branch
          %416 = sbr.rel (%p414) target = $region52
        $region51: #{tpu_custom_call.1} parent=47 // pred_region
          %s417 = sand.u32 %s53, 1
          %s418 = scalar_lea.sflag [#allocation3], %s417
          %s419 = sand.u32 %s53, 1
          %s420 = smul.addr %s419, 4
          %s421 = scalar_lea.vmem [#allocation2], %s420
          %s423 = ssub.s32 64, 64
          %424 = vsyncadd %s418, %s423
          %s425 = sadd.s32 %s37, %s36
          %s426 = smul.addr %s425, 64
          %s427 = scalar_lea.hbm %s0, %s426
          %s429 = sshll.u32 %s421, 4
          %s430 = int_to_ptr.vmem [resolvable:$true] %s429
          %432 = dma.hbm_to_vmem [thread:$0]  %s427, 64, %s430, %s418
        $region52: #{tpu_custom_call.1} parent=47 // pred_fallthru
          _
        // Predicated region
        $region53: #{tpu_custom_call.1} parent=47 // pred_check
          %p433 = pneg %p89
        $region54: #{tpu_custom_call.1} parent=47 // pred_check_branch
          %435 = sbr.rel (%p433) target = $region56
        $region55: #{tpu_custom_call.1} parent=47 // pred_region
          %s436 = sand.u32 %s29, 1
          %s437 = scalar_lea.sflag [#allocation6], %s436
          %s438 = sand.u32 %s79, 1
          %s439 = smul.addr %s438, 4
          %s440 = scalar_lea.vmem [#allocation5], %s439
          %s442 = ssub.s32 64, 64
          %443 = vsyncadd %s437, %s442
          %s444 = smul.addr %s36, 64
          %s445 = scalar_lea.hbm %s1, %s444
          %s447 = sshll.u32 %s440, 4
          %s448 = int_to_ptr.vmem [resolvable:$true] %s447
          %450 = dma.hbm_to_vmem [thread:$0]  %s445, 64, %s448, %s437
        $region56: #{tpu_custom_call.1} parent=47 // pred_fallthru
          _
        // Predicated region
        $region57: #{tpu_custom_call.1} parent=47 // pred_check
          %p451 = pneg %p115
        $region58: #{tpu_custom_call.1} parent=47 // pred_check_branch
          %453 = sbr.rel (%p451) target = $region60
        $region59: #{tpu_custom_call.1} parent=47 // pred_region
          %s454 = sand.u32 %s29, 1
          %s455 = scalar_lea.sflag [#allocation6], %s454
          %s456 = sand.u32 %s105, 1
          %s457 = smul.addr %s456, 4
          %s458 = scalar_lea.vmem [#allocation7], %s457
          %s460 = ssub.s32 64, 64
          %461 = vsyncadd %s455, %s460
          %s462 = smul.addr %s36, 64
          %s463 = scalar_lea.hbm %s2, %s462
          %s465 = sshll.u32 %s458, 4
          %s466 = int_to_ptr.vmem [resolvable:$true] %s465
          %468 = dma.hbm_to_vmem [thread:$0]  %s463, 64, %s466, %s455
        $region60: #{tpu_custom_call.1} parent=47 // pred_fallthru
          _
      $region48: #{tpu_custom_call.1} parent=5 // pred_fallthru
        _
      %p469 = scmp.le.s32.totalorder 1, %s29
      %p470 = scmp.lt.s32.totalorder %s29, 3
      %p471 = pnand %p469, %p470
      %p472 = pneg %p471
      // Predicated region
      $region61: #{tpu_custom_call.1} parent=5 // pred_check
        _
      $region62: #{tpu_custom_call.1} parent=5 // pred_check_branch
        %474 = sbr.rel (%p471) target = $region64
      $region63: #{tpu_custom_call.1} parent=5 // pred_region
        %s475 = ssub.s32 %s29, 1
        %s476 = sand.u32 %s56, 1
        %s477 = scalar_lea.sflag [#allocation3], %s476
        %s478 = sand.u32 %s56, 1
        %s479 = smul.addr %s478, 4
        %s480 = scalar_lea.vmem [#allocation2], %s479
        // Predicated region
        $region65: #{tpu_custom_call.1} parent=63 // pred_check
          %p481 = pneg %p69
        $region66: #{tpu_custom_call.1} parent=63 // pred_check_branch
          %483 = sbr.rel (%p481) target = $region68
        $region67: #{tpu_custom_call.1} parent=63 // pred_region
          %484 = dma.done %s477, 64
        $region68: #{tpu_custom_call.1} parent=63 // pred_fallthru
          _
        %s485 = sand.u32 %s34, 1
        %s486 = scalar_lea.sflag [#allocation6], %s485
        %s487 = sand.u32 %s82, 1
        %s488 = smul.addr %s487, 4
        %s489 = scalar_lea.vmem [#allocation5], %s488
        // Predicated region
        $region69: #{tpu_custom_call.1} parent=63 // pred_check
          %p490 = pneg %p95
        $region70: #{tpu_custom_call.1} parent=63 // pred_check_branch
          %492 = sbr.rel (%p490) target = $region72
        $region71: #{tpu_custom_call.1} parent=63 // pred_region
          %493 = dma.done %s486, 64
        $region72: #{tpu_custom_call.1} parent=63 // pred_fallthru
          _
        %s494 = sand.u32 %s34, 1
        %s495 = scalar_lea.sflag [#allocation6], %s494
        %s496 = sand.u32 %s108, 1
        %s497 = smul.addr %s496, 4
        %s498 = scalar_lea.vmem [#allocation7], %s497
        // Predicated region
        $region73: #{tpu_custom_call.1} parent=63 // pred_check
          %p499 = pneg %p121
        $region74: #{tpu_custom_call.1} parent=63 // pred_check_branch
          %501 = sbr.rel (%p499) target = $region76
        $region75: #{tpu_custom_call.1} parent=63 // pred_region
          %502 = dma.done %s495, 64
        $region76: #{tpu_custom_call.1} parent=63 // pred_fallthru
          _
        // Predicated region
        $region77: #{tpu_custom_call.1} parent=63 // pred_check
          %p503 = pneg %p142
        $region78: #{tpu_custom_call.1} parent=63 // pred_check_branch
          %505 = sbr.rel (%p503) target = $region80
        $region79: #{tpu_custom_call.1} parent=63 // pred_region
          %506 = dma.done [#allocation9], 256
        $region80: #{tpu_custom_call.1} parent=63 // pred_fallthru
          _
        // Predicated region
        $region81: #{tpu_custom_call.1} parent=63 // pred_check
          %p507 = pneg %p163
        $region82: #{tpu_custom_call.1} parent=63 // pred_check_branch
          %509 = sbr.rel (%p507) target = $region84
        $region83: #{tpu_custom_call.1} parent=63 // pred_region
          %510 = dma.done [#allocation9], 64
        $region84: #{tpu_custom_call.1} parent=63 // pred_fallthru
          _
        // Predicated region
        $region85: #{tpu_custom_call.1} parent=63 // pred_check
          %p511 = pneg %p184
        $region86: #{tpu_custom_call.1} parent=63 // pred_check_branch
          %513 = sbr.rel (%p511) target = $region88
        $region87: #{tpu_custom_call.1} parent=63 // pred_region
          %514 = dma.done [#allocation12], 256
        $region88: #{tpu_custom_call.1} parent=63 // pred_fallthru
          _
        // Predicated region
        $region89: #{tpu_custom_call.1} parent=63 // pred_check
          %p515 = pneg %p205
        $region90: #{tpu_custom_call.1} parent=63 // pred_check_branch
          %517 = sbr.rel (%p515) target = $region92
        $region91: #{tpu_custom_call.1} parent=63 // pred_region
          %518 = dma.done [#allocation12], 64
        $region92: #{tpu_custom_call.1} parent=63 // pred_fallthru
          _
        // Predicated region
        $region93: #{tpu_custom_call.1} parent=63 // pred_check
          %p519 = pneg %p226
        $region94: #{tpu_custom_call.1} parent=63 // pred_check_branch
          %521 = sbr.rel (%p519) target = $region96
        $region95: #{tpu_custom_call.1} parent=63 // pred_region
          %522 = dma.done [#allocation15], 256
        $region96: #{tpu_custom_call.1} parent=63 // pred_fallthru
          _
        // Predicated region
        $region97: #{tpu_custom_call.1} parent=63 // pred_check
          %p523 = pneg %p247
        $region98: #{tpu_custom_call.1} parent=63 // pred_check_branch
          %525 = sbr.rel (%p523) target = $region100
        $region99: #{tpu_custom_call.1} parent=63 // pred_region
          %526 = dma.done [#allocation15], 64
        $region100: #{tpu_custom_call.1} parent=63 // pred_fallthru
          _
        %s527 = sand.u32 %s56, 1
        %s528 = scalar_lea.sflag [#allocation3], %s527
        %s529 = sand.u32 %s56, 1
        %s530 = smul.addr %s529, 4
        %s531 = scalar_lea.vmem [#allocation2], %s530
        %p532 = pneg %p69
        %p533 = pneg %p66
        %s534 = sand.u32 %s34, 1
        %s535 = scalar_lea.sflag [#allocation6], %s534
        %s536 = sand.u32 %s82, 1
        %s537 = smul.addr %s536, 4
        %s538 = scalar_lea.vmem [#allocation5], %s537
        %p539 = pneg %p95
        %p540 = pneg %p92
        %s541 = sand.u32 %s34, 1
        %s542 = scalar_lea.sflag [#allocation6], %s541
        %s543 = sand.u32 %s108, 1
        %s544 = smul.addr %s543, 4
        %s545 = scalar_lea.vmem [#allocation7], %s544
        %p546 = pneg %p121
        %p547 = pneg %p118
        %p548 = pneg %p142
        %p549 = pneg %p139
        %p550 = pneg %p163
        %p551 = pneg %p160
        %p552 = pneg %p184
        %p553 = pneg %p181
        %p554 = pneg %p205
        %p555 = pneg %p202
        %p556 = pneg %p226
        %p557 = pneg %p223
        %p558 = pneg %p247
        %p559 = pneg %p244
        %p560 = pneg %p268
        %p561 = pneg %p265
        %p562 = pneg %p289
        %p563 = pneg %p286
        %p564 = pneg %p317
        %p565 = pneg %p314
        %s566 = sand.u32 %s304, 1
        %s567 = scalar_lea.sflag [#allocation4], %s566
        %s568 = sand.u32 %s304, 1
        %s569 = smul.addr %s568, 8
        %s570 = scalar_lea.vmem [#allocation17], %s569
        %v572 = vld [vmem:[%s480] sm:$0xf]
        %v573 = vld [vmem:[%s489] sm:$0xf]
        %v574 = vld [vmem:[%s498] sm:$0xf]
        %v575 = vld [vmem:[#allocation8] sm:$0xf]
        %v576 = vld [vmem:[#allocation10] sm:$0x1]
        %v577 = vlaneseq
        %v578 = vshrl.u32 %v577, 7
        %v579 = vsub.s32 0, %v578
        %v580 = vrot.slane %v576, %v579
        %vm581 = vcmask 261120
        %v583 = vsel %vm581, %v572, 0
        %v586 = vsel %vm581, %v575, 0
        %588 = vmatprep.subr.bf16.mxu0 0
        %589 = vmatpush1.bf16.xpose.msra.mxu0 0
        %590 = vmatprep.subr.bf16.mxu0 0
        %591 = vmatpush1.bf16.xpose.msra.mxu0 0
        %592 = vmatprep.subr.bf16.mxu0 0
        %593 = vmatpush1.bf16.xpose.msra.mxu0 0
        %594 = vmatprep.subr.bf16.mxu0 0
        %595 = vmatpush1.bf16.xpose.msra.mxu0 0
        %596 = vmatprep.subr.bf16.mxu0 0
        %597 = vmatpush1.bf16.xpose.msra.mxu0 0
        %598 = vmatprep.subr.bf16.mxu0 0
        %599 = vmatpush1.bf16.xpose.msra.mxu0 0
        %600 = vmatprep.subr.bf16.mxu0 0
        %601 = vmatpush1.bf16.xpose.msra.mxu0 0
        %602 = vmatprep.subr.bf16.mxu0 0
        %603 = vmatpush1.bf16.xpose.msra.mxu0 %v586
        %604 = vmatprep.subr.bf16.mxu0 0
        %605 = vmatpush2.bf16.xpose.msra.mxu0 0
        %606 = vmatprep.subr.bf16.mxu0 0
        %607 = vmatpush2.bf16.xpose.msra.mxu0 0
        %608 = vmatprep.subr.bf16.mxu0 0
        %609 = vmatpush2.bf16.xpose.msra.mxu0 0
        %610 = vmatprep.subr.bf16.mxu0 0
        %611 = vmatpush2.bf16.xpose.msra.mxu0 0
        %612 = vmatprep.subr.bf16.mxu0 0
        %613 = vmatpush2.bf16.xpose.msra.mxu0 0
        %614 = vmatprep.subr.bf16.mxu0 0
        %615 = vmatpush2.bf16.xpose.msra.mxu0 0
        %616 = vmatprep.subr.bf16.mxu0 0
        %617 = vmatpush2.bf16.xpose.msra.mxu0 0
        %618 = vmatprep.subr.bf16.mxu0 0
        %619 = vmatpush2.bf16.xpose.msra.mxu0 0
        %620 = vmatprep.mubr.bf16.mxu0 0
        %621 = vmatmul.mubr.bf16.gmra.mxu0 %v583
        %v622 = vpop.f32.mrf.mxu0
        %v623 = vadd.f32 %v580, %v622
        %v624 = vpop.f32.mrf.mxu0
        %v625 = vpop.f32.mrf.mxu0
        %v626 = vpop.f32.mrf.mxu0
        %627 = vdwg.mxu0
        %v628 = vmul.f32 %v623, 0.35355338
        %v629 = vld [vmem:[#allocation11] sm:$0xf]
        %v630 = vld [vmem:[#allocation13] sm:$0x1]
        %v631 = vlaneseq
        %v632 = vshrl.u32 %v631, 7
        %v633 = vsub.s32 0, %v632
        %v634 = vrot.slane %v630, %v633
        %v636 = vsel %vm581, %v573, 0
        %v639 = vsel %vm581, %v629, 0
        %641 = vmatprep.subr.bf16.mxu0 0
        %642 = vmatpush1.bf16.xpose.msra.mxu0 0
        %643 = vmatprep.subr.bf16.mxu0 0
        %644 = vmatpush1.bf16.xpose.msra.mxu0 0
        %645 = vmatprep.subr.bf16.mxu0 0
        %646 = vmatpush1.bf16.xpose.msra.mxu0 0
        %647 = vmatprep.subr.bf16.mxu0 0
        %648 = vmatpush1.bf16.xpose.msra.mxu0 0
        %649 = vmatprep.subr.bf16.mxu0 0
        %650 = vmatpush1.bf16.xpose.msra.mxu0 0
        %651 = vmatprep.subr.bf16.mxu0 0
        %652 = vmatpush1.bf16.xpose.msra.mxu0 0
        %653 = vmatprep.subr.bf16.mxu0 0
        %654 = vmatpush1.bf16.xpose.msra.mxu0 0
        %655 = vmatprep.subr.bf16.mxu0 0
        %656 = vmatpush1.bf16.xpose.msra.mxu0 %v639
        %657 = vmatprep.subr.bf16.mxu0 0
        %658 = vmatpush2.bf16.xpose.msra.mxu0 0
        %659 = vmatprep.subr.bf16.mxu0 0
        %660 = vmatpush2.bf16.xpose.msra.mxu0 0
        %661 = vmatprep.subr.bf16.mxu0 0
        %662 = vmatpush2.bf16.xpose.msra.mxu0 0
        %663 = vmatprep.subr.bf16.mxu0 0
        %664 = vmatpush2.bf16.xpose.msra.mxu0 0
        %665 = vmatprep.subr.bf16.mxu0 0
        %666 = vmatpush2.bf16.xpose.msra.mxu0 0
        %667 = vmatprep.subr.bf16.mxu0 0
        %668 = vmatpush2.bf16.xpose.msra.mxu0 0
        %669 = vmatprep.subr.bf16.mxu0 0
        %670 = vmatpush2.bf16.xpose.msra.mxu0 0
        %671 = vmatprep.subr.bf16.mxu0 0
        %672 = vmatpush2.bf16.xpose.msra.mxu0 0
        %673 = vmatprep.mubr.bf16.mxu0 0
        %674 = vmatmul.mubr.bf16.gmra.mxu0 %v636
        %v675 = vpop.f32.mrf.mxu0
        %v676 = vadd.f32 %v634, %v675
        %v677 = vpop.f32.mrf.mxu0
        %v678 = vpop.f32.mrf.mxu0
        %v679 = vpop.f32.mrf.mxu0
        %680 = vdwg.mxu0
        %v681 = vld [vmem:[#allocation14] sm:$0xf]
        %v682 = vld [vmem:[#allocation16] sm:$0x1]
        %v683 = vlaneseq
        %v684 = vshrl.u32 %v683, 7
        %v685 = vsub.s32 0, %v684
        %v686 = vrot.slane %v682, %v685
        %v688 = vsel %vm581, %v574, 0
        %v691 = vsel %vm581, %v681, 0
        %693 = vmatprep.subr.bf16.mxu0 0
        %694 = vmatpush1.bf16.xpose.msra.mxu0 0
        %695 = vmatprep.subr.bf16.mxu0 0
        %696 = vmatpush1.bf16.xpose.msra.mxu0 0
        %697 = vmatprep.subr.bf16.mxu0 0
        %698 = vmatpush1.bf16.xpose.msra.mxu0 0
        %699 = vmatprep.subr.bf16.mxu0 0
        %700 = vmatpush1.bf16.xpose.msra.mxu0 0
        %701 = vmatprep.subr.bf16.mxu0 0
        %702 = vmatpush1.bf16.xpose.msra.mxu0 0
        %703 = vmatprep.subr.bf16.mxu0 0
        %704 = vmatpush1.bf16.xpose.msra.mxu0 0
        %705 = vmatprep.subr.bf16.mxu0 0
        %706 = vmatpush1.bf16.xpose.msra.mxu0 0
        %707 = vmatprep.subr.bf16.mxu0 0
        %708 = vmatpush1.bf16.xpose.msra.mxu0 %v691
        %709 = vmatprep.subr.bf16.mxu0 0
        %710 = vmatpush2.bf16.xpose.msra.mxu0 0
        %711 = vmatprep.subr.bf16.mxu0 0
        %712 = vmatpush2.bf16.xpose.msra.mxu0 0
        %713 = vmatprep.subr.bf16.mxu0 0
        %714 = vmatpush2.bf16.xpose.msra.mxu0 0
        %715 = vmatprep.subr.bf16.mxu0 0
        %716 = vmatpush2.bf16.xpose.msra.mxu0 0
        %717 = vmatprep.subr.bf16.mxu0 0
        %718 = vmatpush2.bf16.xpose.msra.mxu0 0
        %719 = vmatprep.subr.bf16.mxu0 0
        %720 = vmatpush2.bf16.xpose.msra.mxu0 0
        %721 = vmatprep.subr.bf16.mxu0 0
        %722 = vmatpush2.bf16.xpose.msra.mxu0 0
        %723 = vmatprep.subr.bf16.mxu0 0
        %724 = vmatpush2.bf16.xpose.msra.mxu0 0
        %725 = vmatprep.mubr.bf16.mxu0 0
        %726 = vmatmul.mubr.bf16.gmra.mxu0 %v688
        %v727 = vpop.f32.mrf.mxu0
        %v728 = vadd.f32 %v686, %v727
        %v729 = vpop.f32.mrf.mxu0
        %v730 = vpop.f32.mrf.mxu0
        %v731 = vpop.f32.mrf.mxu0
        %732 = vdwg.mxu0
        %v733 = vpack.c.bf16 %v628, %v628
        %v734 = vpack.c.bf16 %v676, %v676
        %vm735 = vcmask 64512
        %v737 = vsel %vm735, %v733, 0
        %v740 = vsel %vm735, %v734, 0
        %742 = vmatprep.subr.bf16.mxu0 0
        %743 = vmatpush1.bf16.xpose.msra.mxu0 0
        %744 = vmatprep.subr.bf16.mxu0 0
        %745 = vmatpush1.bf16.xpose.msra.mxu0 0
        %746 = vmatprep.subr.bf16.mxu0 0
        %747 = vmatpush1.bf16.xpose.msra.mxu0 0
        %748 = vmatprep.subr.bf16.mxu0 0
        %749 = vmatpush1.bf16.xpose.msra.mxu0 0
        %750 = vmatprep.subr.bf16.mxu0 0
        %751 = vmatpush1.bf16.xpose.msra.mxu0 0
        %752 = vmatprep.subr.bf16.mxu0 0
        %753 = vmatpush1.bf16.xpose.msra.mxu0 0
        %754 = vmatprep.subr.bf16.mxu0 0
        %755 = vmatpush1.bf16.xpose.msra.mxu0 0
        %756 = vmatprep.subr.bf16.mxu0 0
        %757 = vmatpush1.bf16.xpose.msra.mxu0 %v740
        %758 = vmatprep.subr.bf16.mxu0 0
        %759 = vmatpush2.bf16.xpose.msra.mxu0 0
        %760 = vmatprep.subr.bf16.mxu0 0
        %761 = vmatpush2.bf16.xpose.msra.mxu0 0
        %762 = vmatprep.subr.bf16.mxu0 0
        %763 = vmatpush2.bf16.xpose.msra.mxu0 0
        %764 = vmatprep.subr.bf16.mxu0 0
        %765 = vmatpush2.bf16.xpose.msra.mxu0 0
        %766 = vmatprep.subr.bf16.mxu0 0
        %767 = vmatpush2.bf16.xpose.msra.mxu0 0
        %768 = vmatprep.subr.bf16.mxu0 0
        %769 = vmatpush2.bf16.xpose.msra.mxu0 0
        %770 = vmatprep.subr.bf16.mxu0 0
        %771 = vmatpush2.bf16.xpose.msra.mxu0 0
        %772 = vmatprep.subr.bf16.mxu0 0
        %773 = vmatpush2.bf16.xpose.msra.mxu0 0
        %774 = vmatprep.mubr.bf16.mxu0 0
        %775 = vmatmul.mubr.bf16.gmra.mxu0 %v737
        %v776 = vpop.f32.mrf.mxu0
        %v777 = vadd.f32 0.0, %v776
        %v778 = vpop.f32.mrf.mxu0
        %v779 = vpop.f32.mrf.mxu0
        %v780 = vpop.f32.mrf.mxu0
        %781 = vdwg.mxu0
        %v782 = vsel %vm735, %v777, -inf
        %783 = vmax.xlane.f32.xlu0 %v782
        %v784 = vpop.xlane.xlu0 %783
        %v785 = vsub.f32 %v777, %v784
        %v786 = vmul.f32 %v785, 1.442695
        %v787 = vpow.pop %v786
        %v788 = vsel %vm735, %v787, 0.0
        %789 = vadd.xlane.f32.xlu0 %v788
        %v790 = vpop.xlane.xlu0 %789
        %v791 = vrcp.pop %v790
        %v792 = vmul.f32 %v787, %v791
        %v793 = vpack.c.bf16 %v792, %v792
        %v794 = vpack.c.bf16 %v728, %v728
        %v796 = vsel %vm735, %v793, 0
        %vm798 = vcmask 1043456
        %v800 = vsel %vm798, %v794, 0
        %802 = vmatprep.subr.bf16.mxu0 0
        %803 = vmatpush1.bf16.msra.mxu0 0
        %804 = vmatprep.subr.bf16.mxu0 0
        %805 = vmatpush1.bf16.msra.mxu0 0
        %806 = vmatprep.subr.bf16.mxu0 0
        %807 = vmatpush1.bf16.msra.mxu0 0
        %808 = vmatprep.subr.bf16.mxu0 0
        %809 = vmatpush1.bf16.msra.mxu0 0
        %810 = vmatprep.subr.bf16.mxu0 0
        %811 = vmatpush1.bf16.msra.mxu0 0
        %812 = vmatprep.subr.bf16.mxu0 0
        %813 = vmatpush1.bf16.msra.mxu0 0
        %814 = vmatprep.subr.bf16.mxu0 0
        %815 = vmatpush1.bf16.msra.mxu0 0
        %816 = vmatprep.subr.bf16.mxu0 0
        %817 = vmatpush1.bf16.msra.mxu0 %v800
        %818 = vmatprep.subr.bf16.mxu0 0
        %819 = vmatpush2.bf16.msra.mxu0 0
        %820 = vmatprep.subr.bf16.mxu0 0
        %821 = vmatpush2.bf16.msra.mxu0 0
        %822 = vmatprep.subr.bf16.mxu0 0
        %823 = vmatpush2.bf16.msra.mxu0 0
        %824 = vmatprep.subr.bf16.mxu0 0
        %825 = vmatpush2.bf16.msra.mxu0 0
        %826 = vmatprep.subr.bf16.mxu0 0
        %827 = vmatpush2.bf16.msra.mxu0 0
        %828 = vmatprep.subr.bf16.mxu0 0
        %829 = vmatpush2.bf16.msra.mxu0 0
        %830 = vmatprep.subr.bf16.mxu0 0
        %831 = vmatpush2.bf16.msra.mxu0 0
        %832 = vmatprep.subr.bf16.mxu0 0
        %833 = vmatpush2.bf16.msra.mxu0 0
        %834 = vmatprep.mubr.bf16.mxu0 0
        %835 = vmatmul.mubr.bf16.gmra.mxu0 %v796
        %v836 = vpop.f32.mrf.mxu0
        %v837 = vadd.f32 0.0, %v836
        %v838 = vpop.f32.mrf.mxu0
        %v839 = vpop.f32.mrf.mxu0
        %v840 = vpop.f32.mrf.mxu0
        %841 = vdwg.mxu0
        %v842 = vpack.c.bf16 %v837, %v837
        %v843 = vld [vmem:[%s9] sm:$0xf]
        %v844 = vld [vmem:[#allocation8 + $0x4] sm:$0xf]
        %v845 = vld [vmem:[#allocation10 + $0x1] sm:$0x1]
        %v846 = vlaneseq
        %v847 = vshrl.u32 %v846, 7
        %v848 = vsub.s32 0, %v847
        %v849 = vrot.slane %v845, %v848
        %v851 = vsel %vm581, %v844, 0
        %853 = vmatprep.subr.bf16.mxu0 0
        %854 = vmatpush1.bf16.xpose.msra.mxu0 0
        %855 = vmatprep.subr.bf16.mxu0 0
        %856 = vmatpush1.bf16.xpose.msra.mxu0 0
        %857 = vmatprep.subr.bf16.mxu0 0
        %858 = vmatpush1.bf16.xpose.msra.mxu0 0
        %859 = vmatprep.subr.bf16.mxu0 0
        %860 = vmatpush1.bf16.xpose.msra.mxu0 0
        %861 = vmatprep.subr.bf16.mxu0 0
        %862 = vmatpush1.bf16.xpose.msra.mxu0 0
        %863 = vmatprep.subr.bf16.mxu0 0
        %864 = vmatpush1.bf16.xpose.msra.mxu0 0
        %865 = vmatprep.subr.bf16.mxu0 0
        %866 = vmatpush1.bf16.xpose.msra.mxu0 0
        %867 = vmatprep.subr.bf16.mxu0 0
        %868 = vmatpush1.bf16.xpose.msra.mxu0 %v851
        %869 = vmatprep.subr.bf16.mxu0 0
        %870 = vmatpush2.bf16.xpose.msra.mxu0 0
        %871 = vmatprep.subr.bf16.mxu0 0
        %872 = vmatpush2.bf16.xpose.msra.mxu0 0
        %873 = vmatprep.subr.bf16.mxu0 0
        %874 = vmatpush2.bf16.xpose.msra.mxu0 0
        %875 = vmatprep.subr.bf16.mxu0 0
        %876 = vmatpush2.bf16.xpose.msra.mxu0 0
        %877 = vmatprep.subr.bf16.mxu0 0
        %878 = vmatpush2.bf16.xpose.msra.mxu0 0
        %879 = vmatprep.subr.bf16.mxu0 0
        %880 = vmatpush2.bf16.xpose.msra.mxu0 0
        %881 = vmatprep.subr.bf16.mxu0 0
        %882 = vmatpush2.bf16.xpose.msra.mxu0 0
        %883 = vmatprep.subr.bf16.mxu0 0
        %884 = vmatpush2.bf16.xpose.msra.mxu0 0
        %885 = vmatprep.mubr.bf16.mxu0 0
        %886 = vmatmul.mubr.bf16.gmra.mxu0 %v583
        %v887 = vpop.f32.mrf.mxu0
        %v888 = vadd.f32 %v849, %v887
        %v889 = vpop.f32.mrf.mxu0
        %v890 = vpop.f32.mrf.mxu0
        %v891 = vpop.f32.mrf.mxu0
        %892 = vdwg.mxu0
        %v893 = vmul.f32 %v888, 0.35355338
        %v894 = vld [vmem:[#allocation11 + $0x4] sm:$0xf]
        %v895 = vld [vmem:[#allocation13 + $0x1] sm:$0x1]
        %v896 = vlaneseq
        %v897 = vshrl.u32 %v896, 7
        %v898 = vsub.s32 0, %v897
        %v899 = vrot.slane %v895, %v898
        %v901 = vsel %vm581, %v894, 0
        %903 = vmatprep.subr.bf16.mxu0 0
        %904 = vmatpush1.bf16.xpose.msra.mxu0 0
        %905 = vmatprep.subr.bf16.mxu0 0
        %906 = vmatpush1.bf16.xpose.msra.mxu0 0
        %907 = vmatprep.subr.bf16.mxu0 0
        %908 = vmatpush1.bf16.xpose.msra.mxu0 0
        %909 = vmatprep.subr.bf16.mxu0 0
        %910 = vmatpush1.bf16.xpose.msra.mxu0 0
        %911 = vmatprep.subr.bf16.mxu0 0
        %912 = vmatpush1.bf16.xpose.msra.mxu0 0
        %913 = vmatprep.subr.bf16.mxu0 0
        %914 = vmatpush1.bf16.xpose.msra.mxu0 0
        %915 = vmatprep.subr.bf16.mxu0 0
        %916 = vmatpush1.bf16.xpose.msra.mxu0 0
        %917 = vmatprep.subr.bf16.mxu0 0
        %918 = vmatpush1.bf16.xpose.msra.mxu0 %v901
        %919 = vmatprep.subr.bf16.mxu0 0
        %920 = vmatpush2.bf16.xpose.msra.mxu0 0
        %921 = vmatprep.subr.bf16.mxu0 0
        %922 = vmatpush2.bf16.xpose.msra.mxu0 0
        %923 = vmatprep.subr.bf16.mxu0 0
        %924 = vmatpush2.bf16.xpose.msra.mxu0 0
        %925 = vmatprep.subr.bf16.mxu0 0
        %926 = vmatpush2.bf16.xpose.msra.mxu0 0
        %927 = vmatprep.subr.bf16.mxu0 0
        %928 = vmatpush2.bf16.xpose.msra.mxu0 0
        %929 = vmatprep.subr.bf16.mxu0 0
        %930 = vmatpush2.bf16.xpose.msra.mxu0 0
        %931 = vmatprep.subr.bf16.mxu0 0
        %932 = vmatpush2.bf16.xpose.msra.mxu0 0
        %933 = vmatprep.subr.bf16.mxu0 0
        %934 = vmatpush2.bf16.xpose.msra.mxu0 0
        %935 = vmatprep.mubr.bf16.mxu0 0
        %936 = vmatmul.mubr.bf16.gmra.mxu0 %v636
        %v937 = vpop.f32.mrf.mxu0
        %v938 = vadd.f32 %v899, %v937
        %v939 = vpop.f32.mrf.mxu0
        %v940 = vpop.f32.mrf.mxu0
        %v941 = vpop.f32.mrf.mxu0
        %942 = vdwg.mxu0
        %v943 = vld [vmem:[#allocation14 + $0x4] sm:$0xf]
        %v944 = vld [vmem:[#allocation16 + $0x1] sm:$0x1]
        %v945 = vlaneseq
        %v946 = vshrl.u32 %v945, 7
        %v947 = vsub.s32 0, %v946
        %v948 = vrot.slane %v944, %v947
        %v950 = vsel %vm581, %v943, 0
        %952 = vmatprep.subr.bf16.mxu0 0
        %953 = vmatpush1.bf16.xpose.msra.mxu0 0
        %954 = vmatprep.subr.bf16.mxu0 0
        %955 = vmatpush1.bf16.xpose.msra.mxu0 0
        %956 = vmatprep.subr.bf16.mxu0 0
        %957 = vmatpush1.bf16.xpose.msra.mxu0 0
        %958 = vmatprep.subr.bf16.mxu0 0
        %959 = vmatpush1.bf16.xpose.msra.mxu0 0
        %960 = vmatprep.subr.bf16.mxu0 0
        %961 = vmatpush1.bf16.xpose.msra.mxu0 0
        %962 = vmatprep.subr.bf16.mxu0 0
        %963 = vmatpush1.bf16.xpose.msra.mxu0 0
        %964 = vmatprep.subr.bf16.mxu0 0
        %965 = vmatpush1.bf16.xpose.msra.mxu0 0
        %966 = vmatprep.subr.bf16.mxu0 0
        %967 = vmatpush1.bf16.xpose.msra.mxu0 %v950
        %968 = vmatprep.subr.bf16.mxu0 0
        %969 = vmatpush2.bf16.xpose.msra.mxu0 0
        %970 = vmatprep.subr.bf16.mxu0 0
        %971 = vmatpush2.bf16.xpose.msra.mxu0 0
        %972 = vmatprep.subr.bf16.mxu0 0
        %973 = vmatpush2.bf16.xpose.msra.mxu0 0
        %974 = vmatprep.subr.bf16.mxu0 0
        %975 = vmatpush2.bf16.xpose.msra.mxu0 0
        %976 = vmatprep.subr.bf16.mxu0 0
        %977 = vmatpush2.bf16.xpose.msra.mxu0 0
        %978 = vmatprep.subr.bf16.mxu0 0
        %979 = vmatpush2.bf16.xpose.msra.mxu0 0
        %980 = vmatprep.subr.bf16.mxu0 0
        %981 = vmatpush2.bf16.xpose.msra.mxu0 0
        %982 = vmatprep.subr.bf16.mxu0 0
        %983 = vmatpush2.bf16.xpose.msra.mxu0 0
        %984 = vmatprep.mubr.bf16.mxu0 0
        %985 = vmatmul.mubr.bf16.gmra.mxu0 %v688
        %v986 = vpop.f32.mrf.mxu0
        %v987 = vadd.f32 %v948, %v986
        %v988 = vpop.f32.mrf.mxu0
        %v989 = vpop.f32.mrf.mxu0
        %v990 = vpop.f32.mrf.mxu0
        %991 = vdwg.mxu0
        %v992 = vpack.c.bf16 %v893, %v893
        %v993 = vpack.c.bf16 %v938, %v938
        %v995 = vsel %vm735, %v992, 0
        %v998 = vsel %vm735, %v993, 0
        %1000 = vmatprep.subr.bf16.mxu0 0
        %1001 = vmatpush1.bf16.xpose.msra.mxu0 0
        %1002 = vmatprep.subr.bf16.mxu0 0
        %1003 = vmatpush1.bf16.xpose.msra.mxu0 0
        %1004 = vmatprep.subr.bf16.mxu0 0
        %1005 = vmatpush1.bf16.xpose.msra.mxu0 0
        %1006 = vmatprep.subr.bf16.mxu0 0
        %1007 = vmatpush1.bf16.xpose.msra.mxu0 0
        %1008 = vmatprep.subr.bf16.mxu0 0
        %1009 = vmatpush1.bf16.xpose.msra.mxu0 0
        %1010 = vmatprep.subr.bf16.mxu0 0
        %1011 = vmatpush1.bf16.xpose.msra.mxu0 0
        %1012 = vmatprep.subr.bf16.mxu0 0
        %1013 = vmatpush1.bf16.xpose.msra.mxu0 0
        %1014 = vmatprep.subr.bf16.mxu0 0
        %1015 = vmatpush1.bf16.xpose.msra.mxu0 %v998
        %1016 = vmatprep.subr.bf16.mxu0 0
        %1017 = vmatpush2.bf16.xpose.msra.mxu0 0
        %1018 = vmatprep.subr.bf16.mxu0 0
        %1019 = vmatpush2.bf16.xpose.msra.mxu0 0
        %1020 = vmatprep.subr.bf16.mxu0 0
        %1021 = vmatpush2.bf16.xpose.msra.mxu0 0
        %1022 = vmatprep.subr.bf16.mxu0 0
        %1023 = vmatpush2.bf16.xpose.msra.mxu0 0
        %1024 = vmatprep.subr.bf16.mxu0 0
        %1025 = vmatpush2.bf16.xpose.msra.mxu0 0
        %1026 = vmatprep.subr.bf16.mxu0 0
        %1027 = vmatpush2.bf16.xpose.msra.mxu0 0
        %1028 = vmatprep.subr.bf16.mxu0 0
        %1029 = vmatpush2.bf16.xpose.msra.mxu0 0
        %1030 = vmatprep.subr.bf16.mxu0 0
        %1031 = vmatpush2.bf16.xpose.msra.mxu0 0
        %1032 = vmatprep.mubr.bf16.mxu0 0
        %1033 = vmatmul.mubr.bf16.gmra.mxu0 %v995
        %v1034 = vpop.f32.mrf.mxu0
        %v1035 = vadd.f32 0.0, %v1034
        %v1036 = vpop.f32.mrf.mxu0
        %v1037 = vpop.f32.mrf.mxu0
        %v1038 = vpop.f32.mrf.mxu0
        %1039 = vdwg.mxu0
        %v1040 = vsel %vm735, %v1035, -inf
        %1041 = vmax.xlane.f32.xlu0 %v1040
        %v1042 = vpop.xlane.xlu0 %1041
        %v1043 = vsub.f32 %v1035, %v1042
        %v1044 = vmul.f32 %v1043, 1.442695
        %v1045 = vpow.pop %v1044
        %v1046 = vsel %vm735, %v1045, 0.0
        %1047 = vadd.xlane.f32.xlu0 %v1046
        %v1048 = vpop.xlane.xlu0 %1047
        %v1049 = vrcp.pop %v1048
        %v1050 = vmul.f32 %v1045, %v1049
        %v1051 = vpack.c.bf16 %v1050, %v1050
        %v1052 = vpack.c.bf16 %v987, %v987
        %v1054 = vsel %vm735, %v1051, 0
        %v1057 = vsel %vm798, %v1052, 0
        %1059 = vmatprep.subr.bf16.mxu0 0
        %1060 = vmatpush1.bf16.msra.mxu0 0
        %1061 = vmatprep.subr.bf16.mxu0 0
        %1062 = vmatpush1.bf16.msra.mxu0 0
        %1063 = vmatprep.subr.bf16.mxu0 0
        %1064 = vmatpush1.bf16.msra.mxu0 0
        %1065 = vmatprep.subr.bf16.mxu0 0
        %1066 = vmatpush1.bf16.msra.mxu0 0
        %1067 = vmatprep.subr.bf16.mxu0 0
        %1068 = vmatpush1.bf16.msra.mxu0 0
        %1069 = vmatprep.subr.bf16.mxu0 0
        %1070 = vmatpush1.bf16.msra.mxu0 0
        %1071 = vmatprep.subr.bf16.mxu0 0
        %1072 = vmatpush1.bf16.msra.mxu0 0
        %1073 = vmatprep.subr.bf16.mxu0 0
        %1074 = vmatpush1.bf16.msra.mxu0 %v1057
        %1075 = vmatprep.subr.bf16.mxu0 0
        %1076 = vmatpush2.bf16.msra.mxu0 0
        %1077 = vmatprep.subr.bf16.mxu0 0
        %1078 = vmatpush2.bf16.msra.mxu0 0
        %1079 = vmatprep.subr.bf16.mxu0 0
        %1080 = vmatpush2.bf16.msra.mxu0 0
        %1081 = vmatprep.subr.bf16.mxu0 0
        %1082 = vmatpush2.bf16.msra.mxu0 0
        %1083 = vmatprep.subr.bf16.mxu0 0
        %1084 = vmatpush2.bf16.msra.mxu0 0
        %1085 = vmatprep.subr.bf16.mxu0 0
        %1086 = vmatpush2.bf16.msra.mxu0 0
        %1087 = vmatprep.subr.bf16.mxu0 0
        %1088 = vmatpush2.bf16.msra.mxu0 0
        %1089 = vmatprep.subr.bf16.mxu0 0
        %1090 = vmatpush2.bf16.msra.mxu0 0
        %1091 = vmatprep.mubr.bf16.mxu0 0
        %1092 = vmatmul.mubr.bf16.gmra.mxu0 %v1054
        %v1093 = vpop.f32.mrf.mxu0
        %v1094 = vadd.f32 0.0, %v1093
        %v1095 = vpop.f32.mrf.mxu0
        %v1096 = vpop.f32.mrf.mxu0
        %v1097 = vpop.f32.mrf.mxu0
        %1098 = vdwg.mxu0
        %v1099 = vpack.c.bf16 %v1094, %v1094
        %v1100 = vld [vmem:[%s9 + $0x4] sm:$0xf]
        %v1102 = vsel %vm735, %v1099, 0
        %v1105 = vsel %vm798, %v1100, 0
        %1107 = vmatprep.subr.bf16.mxu0 0
        %1108 = vmatpush1.bf16.msra.mxu0 0
        %1109 = vmatprep.subr.bf16.mxu0 0
        %1110 = vmatpush1.bf16.msra.mxu0 0
        %1111 = vmatprep.subr.bf16.mxu0 0
        %1112 = vmatpush1.bf16.msra.mxu0 0
        %1113 = vmatprep.subr.bf16.mxu0 0
        %1114 = vmatpush1.bf16.msra.mxu0 0
        %1115 = vmatprep.subr.bf16.mxu0 0
        %1116 = vmatpush1.bf16.msra.mxu0 0
        %1117 = vmatprep.subr.bf16.mxu0 0
        %1118 = vmatpush1.bf16.msra.mxu0 0
        %1119 = vmatprep.subr.bf16.mxu0 0
        %1120 = vmatpush1.bf16.msra.mxu0 0
        %1121 = vmatprep.subr.bf16.mxu0 0
        %1122 = vmatpush1.bf16.msra.mxu0 %v1105
        %1123 = vmatprep.subr.bf16.mxu0 0
        %1124 = vmatpush2.bf16.msra.mxu0 0
        %1125 = vmatprep.subr.bf16.mxu0 0
        %1126 = vmatpush2.bf16.msra.mxu0 0
        %1127 = vmatprep.subr.bf16.mxu0 0
        %1128 = vmatpush2.bf16.msra.mxu0 0
        %1129 = vmatprep.subr.bf16.mxu0 0
        %1130 = vmatpush2.bf16.msra.mxu0 0
        %1131 = vmatprep.subr.bf16.mxu0 0
        %1132 = vmatpush2.bf16.msra.mxu0 0
        %1133 = vmatprep.subr.bf16.mxu0 0
        %1134 = vmatpush2.bf16.msra.mxu0 0
        %1135 = vmatprep.subr.bf16.mxu0 0
        %1136 = vmatpush2.bf16.msra.mxu0 0
        %1137 = vmatprep.subr.bf16.mxu0 0
        %1138 = vmatpush2.bf16.msra.mxu0 0
        %1139 = vmatprep.mubr.bf16.mxu0 0
        %1140 = vmatmul.mubr.bf16.gmra.mxu0 %v1102
        %v1141 = vpop.f32.mrf.mxu0
        %v1142 = vadd.f32 0.0, %v1141
        %v1143 = vpop.f32.mrf.mxu0
        %v1144 = vpop.f32.mrf.mxu0
        %v1145 = vpop.f32.mrf.mxu0
        %1146 = vdwg.mxu0
        %v1148 = vsel %vm735, %v842, 0
        %v1151 = vsel %vm798, %v843, 0
        %1153 = vmatprep.subr.bf16.mxu0 0
        %1154 = vmatpush1.bf16.msra.mxu0 0
        %1155 = vmatprep.subr.bf16.mxu0 0
        %1156 = vmatpush1.bf16.msra.mxu0 0
        %1157 = vmatprep.subr.bf16.mxu0 0
        %1158 = vmatpush1.bf16.msra.mxu0 0
        %1159 = vmatprep.subr.bf16.mxu0 0
        %1160 = vmatpush1.bf16.msra.mxu0 0
        %1161 = vmatprep.subr.bf16.mxu0 0
        %1162 = vmatpush1.bf16.msra.mxu0 0
        %1163 = vmatprep.subr.bf16.mxu0 0
        %1164 = vmatpush1.bf16.msra.mxu0 0
        %1165 = vmatprep.subr.bf16.mxu0 0
        %1166 = vmatpush1.bf16.msra.mxu0 0
        %1167 = vmatprep.subr.bf16.mxu0 0
        %1168 = vmatpush1.bf16.msra.mxu0 %v1151
        %1169 = vmatprep.subr.bf16.mxu0 0
        %1170 = vmatpush2.bf16.msra.mxu0 0
        %1171 = vmatprep.subr.bf16.mxu0 0
        %1172 = vmatpush2.bf16.msra.mxu0 0
        %1173 = vmatprep.subr.bf16.mxu0 0
        %1174 = vmatpush2.bf16.msra.mxu0 0
        %1175 = vmatprep.subr.bf16.mxu0 0
        %1176 = vmatpush2.bf16.msra.mxu0 0
        %1177 = vmatprep.subr.bf16.mxu0 0
        %1178 = vmatpush2.bf16.msra.mxu0 0
        %1179 = vmatprep.subr.bf16.mxu0 0
        %1180 = vmatpush2.bf16.msra.mxu0 0
        %1181 = vmatprep.subr.bf16.mxu0 0
        %1182 = vmatpush2.bf16.msra.mxu0 0
        %1183 = vmatprep.subr.bf16.mxu0 0
        %1184 = vmatpush2.bf16.msra.mxu0 0
        %1185 = vmatprep.mubr.bf16.mxu0 0
        %1186 = vmatmul.mubr.bf16.gmra.mxu0 %v1148
        %v1187 = vpop.f32.mrf.mxu0
        %v1188 = vadd.f32 %v1142, %v1187
        %v1189 = vpop.f32.mrf.mxu0
        %v1190 = vpop.f32.mrf.mxu0
        %v1191 = vpop.f32.mrf.mxu0
        %1192 = vdwg.mxu0
        %v1193 = vld [vmem:[#allocation8 + $0x8] sm:$0xf]
        %v1194 = vld [vmem:[#allocation10 + $0x2] sm:$0x1]
        %v1195 = vlaneseq
        %v1196 = vshrl.u32 %v1195, 7
        %v1197 = vsub.s32 0, %v1196
        %v1198 = vrot.slane %v1194, %v1197
        %v1200 = vsel %vm581, %v1193, 0
        %1202 = vmatprep.subr.bf16.mxu0 0
        %1203 = vmatpush1.bf16.xpose.msra.mxu0 0
        %1204 = vmatprep.subr.bf16.mxu0 0
        %1205 = vmatpush1.bf16.xpose.msra.mxu0 0
        %1206 = vmatprep.subr.bf16.mxu0 0
        %1207 = vmatpush1.bf16.xpose.msra.mxu0 0
        %1208 = vmatprep.subr.bf16.mxu0 0
        %1209 = vmatpush1.bf16.xpose.msra.mxu0 0
        %1210 = vmatprep.subr.bf16.mxu0 0
        %1211 = vmatpush1.bf16.xpose.msra.mxu0 0
        %1212 = vmatprep.subr.bf16.mxu0 0
        %1213 = vmatpush1.bf16.xpose.msra.mxu0 0
        %1214 = vmatprep.subr.bf16.mxu0 0
        %1215 = vmatpush1.bf16.xpose.msra.mxu0 0
        %1216 = vmatprep.subr.bf16.mxu0 0
        %1217 = vmatpush1.bf16.xpose.msra.mxu0 %v1200
        %1218 = vmatprep.subr.bf16.mxu0 0
        %1219 = vmatpush2.bf16.xpose.msra.mxu0 0
        %1220 = vmatprep.subr.bf16.mxu0 0
        %1221 = vmatpush2.bf16.xpose.msra.mxu0 0
        %1222 = vmatprep.subr.bf16.mxu0 0
        %1223 = vmatpush2.bf16.xpose.msra.mxu0 0
        %1224 = vmatprep.subr.bf16.mxu0 0
        %1225 = vmatpush2.bf16.xpose.msra.mxu0 0
        %1226 = vmatprep.subr.bf16.mxu0 0
        %1227 = vmatpush2.bf16.xpose.msra.mxu0 0
        %1228 = vmatprep.subr.bf16.mxu0 0
        %1229 = vmatpush2.bf16.xpose.msra.mxu0 0
        %1230 = vmatprep.subr.bf16.mxu0 0
        %1231 = vmatpush2.bf16.xpose.msra.mxu0 0
        %1232 = vmatprep.subr.bf16.mxu0 0
        %1233 = vmatpush2.bf16.xpose.msra.mxu0 0
        %1234 = vmatprep.mubr.bf16.mxu0 0
        %1235 = vmatmul.mubr.bf16.gmra.mxu0 %v583
        %v1236 = vpop.f32.mrf.mxu0
        %v1237 = vadd.f32 %v1198, %v1236
        %v1238 = vpop.f32.mrf.mxu0
        %v1239 = vpop.f32.mrf.mxu0
        %v1240 = vpop.f32.mrf.mxu0
        %1241 = vdwg.mxu0
        %v1242 = vmul.f32 %v1237, 0.35355338
        %v1243 = vld [vmem:[#allocation11 + $0x8] sm:$0xf]
        %v1244 = vld [vmem:[#allocation13 + $0x2] sm:$0x1]
        %v1245 = vlaneseq
        %v1246 = vshrl.u32 %v1245, 7
        %v1247 = vsub.s32 0, %v1246
        %v1248 = vrot.slane %v1244, %v1247
        %v1250 = vsel %vm581, %v1243, 0
        %1252 = vmatprep.subr.bf16.mxu0 0
        %1253 = vmatpush1.bf16.xpose.msra.mxu0 0
        %1254 = vmatprep.subr.bf16.mxu0 0
        %1255 = vmatpush1.bf16.xpose.msra.mxu0 0
        %1256 = vmatprep.subr.bf16.mxu0 0
        %1257 = vmatpush1.bf16.xpose.msra.mxu0 0
        %1258 = vmatprep.subr.bf16.mxu0 0
        %1259 = vmatpush1.bf16.xpose.msra.mxu0 0
        %1260 = vmatprep.subr.bf16.mxu0 0
        %1261 = vmatpush1.bf16.xpose.msra.mxu0 0
        %1262 = vmatprep.subr.bf16.mxu0 0
        %1263 = vmatpush1.bf16.xpose.msra.mxu0 0
        %1264 = vmatprep.subr.bf16.mxu0 0
        %1265 = vmatpush1.bf16.xpose.msra.mxu0 0
        %1266 = vmatprep.subr.bf16.mxu0 0
        %1267 = vmatpush1.bf16.xpose.msra.mxu0 %v1250
        %1268 = vmatprep.subr.bf16.mxu0 0
        %1269 = vmatpush2.bf16.xpose.msra.mxu0 0
        %1270 = vmatprep.subr.bf16.mxu0 0
        %1271 = vmatpush2.bf16.xpose.msra.mxu0 0
        %1272 = vmatprep.subr.bf16.mxu0 0
        %1273 = vmatpush2.bf16.xpose.msra.mxu0 0
        %1274 = vmatprep.subr.bf16.mxu0 0
        %1275 = vmatpush2.bf16.xpose.msra.mxu0 0
        %1276 = vmatprep.subr.bf16.mxu0 0
        %1277 = vmatpush2.bf16.xpose.msra.mxu0 0
        %1278 = vmatprep.subr.bf16.mxu0 0
        %1279 = vmatpush2.bf16.xpose.msra.mxu0 0
        %1280 = vmatprep.subr.bf16.mxu0 0
        %1281 = vmatpush2.bf16.xpose.msra.mxu0 0
        %1282 = vmatprep.subr.bf16.mxu0 0
        %1283 = vmatpush2.bf16.xpose.msra.mxu0 0
        %1284 = vmatprep.mubr.bf16.mxu0 0
        %1285 = vmatmul.mubr.bf16.gmra.mxu0 %v636
        %v1286 = vpop.f32.mrf.mxu0
        %v1287 = vadd.f32 %v1248, %v1286
        %v1288 = vpop.f32.mrf.mxu0
        %v1289 = vpop.f32.mrf.mxu0
        %v1290 = vpop.f32.mrf.mxu0
        %1291 = vdwg.mxu0
        %v1292 = vld [vmem:[#allocation14 + $0x8] sm:$0xf]
        %v1293 = vld [vmem:[#allocation16 + $0x2] sm:$0x1]
        %v1294 = vlaneseq
        %v1295 = vshrl.u32 %v1294, 7
        %v1296 = vsub.s32 0, %v1295
        %v1297 = vrot.slane %v1293, %v1296
        %v1299 = vsel %vm581, %v1292, 0
        %1301 = vmatprep.subr.bf16.mxu0 0
        %1302 = vmatpush1.bf16.xpose.msra.mxu0 0
        %1303 = vmatprep.subr.bf16.mxu0 0
        %1304 = vmatpush1.bf16.xpose.msra.mxu0 0
        %1305 = vmatprep.subr.bf16.mxu0 0
        %1306 = vmatpush1.bf16.xpose.msra.mxu0 0
        %1307 = vmatprep.subr.bf16.mxu0 0
        %1308 = vmatpush1.bf16.xpose.msra.mxu0 0
        %1309 = vmatprep.subr.bf16.mxu0 0
        %1310 = vmatpush1.bf16.xpose.msra.mxu0 0
        %1311 = vmatprep.subr.bf16.mxu0 0
        %1312 = vmatpush1.bf16.xpose.msra.mxu0 0
        %1313 = vmatprep.subr.bf16.mxu0 0
        %1314 = vmatpush1.bf16.xpose.msra.mxu0 0
        %1315 = vmatprep.subr.bf16.mxu0 0
        %1316 = vmatpush1.bf16.xpose.msra.mxu0 %v1299
        %1317 = vmatprep.subr.bf16.mxu0 0
        %1318 = vmatpush2.bf16.xpose.msra.mxu0 0
        %1319 = vmatprep.subr.bf16.mxu0 0
        %1320 = vmatpush2.bf16.xpose.msra.mxu0 0
        %1321 = vmatprep.subr.bf16.mxu0 0
        %1322 = vmatpush2.bf16.xpose.msra.mxu0 0
        %1323 = vmatprep.subr.bf16.mxu0 0
        %1324 = vmatpush2.bf16.xpose.msra.mxu0 0
        %1325 = vmatprep.subr.bf16.mxu0 0
        %1326 = vmatpush2.bf16.xpose.msra.mxu0 0
        %1327 = vmatprep.subr.bf16.mxu0 0
        %1328 = vmatpush2.bf16.xpose.msra.mxu0 0
        %1329 = vmatprep.subr.bf16.mxu0 0
        %1330 = vmatpush2.bf16.xpose.msra.mxu0 0
        %1331 = vmatprep.subr.bf16.mxu0 0
        %1332 = vmatpush2.bf16.xpose.msra.mxu0 0
        %1333 = vmatprep.mubr.bf16.mxu0 0
        %1334 = vmatmul.mubr.bf16.gmra.mxu0 %v688
        %v1335 = vpop.f32.mrf.mxu0
        %v1336 = vadd.f32 %v1297, %v1335
        %v1337 = vpop.f32.mrf.mxu0
        %v1338 = vpop.f32.mrf.mxu0
        %v1339 = vpop.f32.mrf.mxu0
        %1340 = vdwg.mxu0
        %v1341 = vpack.c.bf16 %v1242, %v1242
        %v1342 = vpack.c.bf16 %v1287, %v1287
        %v1344 = vsel %vm735, %v1341, 0
        %v1347 = vsel %vm735, %v1342, 0
        %1349 = vmatprep.subr.bf16.mxu0 0
        %1350 = vmatpush1.bf16.xpose.msra.mxu0 0
        %1351 = vmatprep.subr.bf16.mxu0 0
        %1352 = vmatpush1.bf16.xpose.msra.mxu0 0
        %1353 = vmatprep.subr.bf16.mxu0 0
        %1354 = vmatpush1.bf16.xpose.msra.mxu0 0
        %1355 = vmatprep.subr.bf16.mxu0 0
        %1356 = vmatpush1.bf16.xpose.msra.mxu0 0
        %1357 = vmatprep.subr.bf16.mxu0 0
        %1358 = vmatpush1.bf16.xpose.msra.mxu0 0
        %1359 = vmatprep.subr.bf16.mxu0 0
        %1360 = vmatpush1.bf16.xpose.msra.mxu0 0
        %1361 = vmatprep.subr.bf16.mxu0 0
        %1362 = vmatpush1.bf16.xpose.msra.mxu0 0
        %1363 = vmatprep.subr.bf16.mxu0 0
        %1364 = vmatpush1.bf16.xpose.msra.mxu0 %v1347
        %1365 = vmatprep.subr.bf16.mxu0 0
        %1366 = vmatpush2.bf16.xpose.msra.mxu0 0
        %1367 = vmatprep.subr.bf16.mxu0 0
        %1368 = vmatpush2.bf16.xpose.msra.mxu0 0
        %1369 = vmatprep.subr.bf16.mxu0 0
        %1370 = vmatpush2.bf16.xpose.msra.mxu0 0
        %1371 = vmatprep.subr.bf16.mxu0 0
        %1372 = vmatpush2.bf16.xpose.msra.mxu0 0
        %1373 = vmatprep.subr.bf16.mxu0 0
        %1374 = vmatpush2.bf16.xpose.msra.mxu0 0
        %1375 = vmatprep.subr.bf16.mxu0 0
        %1376 = vmatpush2.bf16.xpose.msra.mxu0 0
        %1377 = vmatprep.subr.bf16.mxu0 0
        %1378 = vmatpush2.bf16.xpose.msra.mxu0 0
        %1379 = vmatprep.subr.bf16.mxu0 0
        %1380 = vmatpush2.bf16.xpose.msra.mxu0 0
        %1381 = vmatprep.mubr.bf16.mxu0 0
        %1382 = vmatmul.mubr.bf16.gmra.mxu0 %v1344
        %v1383 = vpop.f32.mrf.mxu0
        %v1384 = vadd.f32 0.0, %v1383
        %v1385 = vpop.f32.mrf.mxu0
        %v1386 = vpop.f32.mrf.mxu0
        %v1387 = vpop.f32.mrf.mxu0
        %1388 = vdwg.mxu0
        %v1389 = vsel %vm735, %v1384, -inf
        %1390 = vmax.xlane.f32.xlu0 %v1389
        %v1391 = vpop.xlane.xlu0 %1390
        %v1392 = vsub.f32 %v1384, %v1391
        %v1393 = vmul.f32 %v1392, 1.442695
        %v1394 = vpow.pop %v1393
        %v1395 = vsel %vm735, %v1394, 0.0
        %1396 = vadd.xlane.f32.xlu0 %v1395
        %v1397 = vpop.xlane.xlu0 %1396
        %v1398 = vrcp.pop %v1397
        %v1399 = vmul.f32 %v1394, %v1398
        %v1400 = vpack.c.bf16 %v1399, %v1399
        %v1401 = vpack.c.bf16 %v1336, %v1336
        %v1403 = vsel %vm735, %v1400, 0
        %v1406 = vsel %vm798, %v1401, 0
        %1408 = vmatprep.subr.bf16.mxu0 0
        %1409 = vmatpush1.bf16.msra.mxu0 0
        %1410 = vmatprep.subr.bf16.mxu0 0
        %1411 = vmatpush1.bf16.msra.mxu0 0
        %1412 = vmatprep.subr.bf16.mxu0 0
        %1413 = vmatpush1.bf16.msra.mxu0 0
        %1414 = vmatprep.subr.bf16.mxu0 0
        %1415 = vmatpush1.bf16.msra.mxu0 0
        %1416 = vmatprep.subr.bf16.mxu0 0
        %1417 = vmatpush1.bf16.msra.mxu0 0
        %1418 = vmatprep.subr.bf16.mxu0 0
        %1419 = vmatpush1.bf16.msra.mxu0 0
        %1420 = vmatprep.subr.bf16.mxu0 0
        %1421 = vmatpush1.bf16.msra.mxu0 0
        %1422 = vmatprep.subr.bf16.mxu0 0
        %1423 = vmatpush1.bf16.msra.mxu0 %v1406
        %1424 = vmatprep.subr.bf16.mxu0 0
        %1425 = vmatpush2.bf16.msra.mxu0 0
        %1426 = vmatprep.subr.bf16.mxu0 0
        %1427 = vmatpush2.bf16.msra.mxu0 0
        %1428 = vmatprep.subr.bf16.mxu0 0
        %1429 = vmatpush2.bf16.msra.mxu0 0
        %1430 = vmatprep.subr.bf16.mxu0 0
        %1431 = vmatpush2.bf16.msra.mxu0 0
        %1432 = vmatprep.subr.bf16.mxu0 0
        %1433 = vmatpush2.bf16.msra.mxu0 0
        %1434 = vmatprep.subr.bf16.mxu0 0
        %1435 = vmatpush2.bf16.msra.mxu0 0
        %1436 = vmatprep.subr.bf16.mxu0 0
        %1437 = vmatpush2.bf16.msra.mxu0 0
        %1438 = vmatprep.subr.bf16.mxu0 0
        %1439 = vmatpush2.bf16.msra.mxu0 0
        %1440 = vmatprep.mubr.bf16.mxu0 0
        %1441 = vmatmul.mubr.bf16.gmra.mxu0 %v1403
        %v1442 = vpop.f32.mrf.mxu0
        %v1443 = vadd.f32 0.0, %v1442
        %v1444 = vpop.f32.mrf.mxu0
        %v1445 = vpop.f32.mrf.mxu0
        %v1446 = vpop.f32.mrf.mxu0
        %1447 = vdwg.mxu0
        %v1448 = vpack.c.bf16 %v1443, %v1443
        %v1449 = vld [vmem:[%s9 + $0x8] sm:$0xf]
        %v1451 = vsel %vm735, %v1448, 0
        %v1454 = vsel %vm798, %v1449, 0
        %1456 = vmatprep.subr.bf16.mxu0 0
        %1457 = vmatpush1.bf16.msra.mxu0 0
        %1458 = vmatprep.subr.bf16.mxu0 0
        %1459 = vmatpush1.bf16.msra.mxu0 0
        %1460 = vmatprep.subr.bf16.mxu0 0
        %1461 = vmatpush1.bf16.msra.mxu0 0
        %1462 = vmatprep.subr.bf16.mxu0 0
        %1463 = vmatpush1.bf16.msra.mxu0 0
        %1464 = vmatprep.subr.bf16.mxu0 0
        %1465 = vmatpush1.bf16.msra.mxu0 0
        %1466 = vmatprep.subr.bf16.mxu0 0
        %1467 = vmatpush1.bf16.msra.mxu0 0
        %1468 = vmatprep.subr.bf16.mxu0 0
        %1469 = vmatpush1.bf16.msra.mxu0 0
        %1470 = vmatprep.subr.bf16.mxu0 0
        %1471 = vmatpush1.bf16.msra.mxu0 %v1454
        %1472 = vmatprep.subr.bf16.mxu0 0
        %1473 = vmatpush2.bf16.msra.mxu0 0
        %1474 = vmatprep.subr.bf16.mxu0 0
        %1475 = vmatpush2.bf16.msra.mxu0 0
        %1476 = vmatprep.subr.bf16.mxu0 0
        %1477 = vmatpush2.bf16.msra.mxu0 0
        %1478 = vmatprep.subr.bf16.mxu0 0
        %1479 = vmatpush2.bf16.msra.mxu0 0
        %1480 = vmatprep.subr.bf16.mxu0 0
        %1481 = vmatpush2.bf16.msra.mxu0 0
        %1482 = vmatprep.subr.bf16.mxu0 0
        %1483 = vmatpush2.bf16.msra.mxu0 0
        %1484 = vmatprep.subr.bf16.mxu0 0
        %1485 = vmatpush2.bf16.msra.mxu0 0
        %1486 = vmatprep.subr.bf16.mxu0 0
        %1487 = vmatpush2.bf16.msra.mxu0 0
        %1488 = vmatprep.mubr.bf16.mxu0 0
        %1489 = vmatmul.mubr.bf16.gmra.mxu0 %v1451
        %v1490 = vpop.f32.mrf.mxu0
        %v1491 = vadd.f32 0.0, %v1490
        %v1492 = vpop.f32.mrf.mxu0
        %v1493 = vpop.f32.mrf.mxu0
        %v1494 = vpop.f32.mrf.mxu0
        %1495 = vdwg.mxu0
        %v1496 = vadd.f32 %v1188, %v1491
        %v1497 = vld [vmem:[#allocation8 + $0xc] sm:$0xf]
        %v1498 = vld [vmem:[#allocation10 + $0x3] sm:$0x1]
        %v1499 = vlaneseq
        %v1500 = vshrl.u32 %v1499, 7
        %v1501 = vsub.s32 0, %v1500
        %v1502 = vrot.slane %v1498, %v1501
        %v1504 = vsel %vm581, %v1497, 0
        %1506 = vmatprep.subr.bf16.mxu0 0
        %1507 = vmatpush1.bf16.xpose.msra.mxu0 0
        %1508 = vmatprep.subr.bf16.mxu0 0
        %1509 = vmatpush1.bf16.xpose.msra.mxu0 0
        %1510 = vmatprep.subr.bf16.mxu0 0
        %1511 = vmatpush1.bf16.xpose.msra.mxu0 0
        %1512 = vmatprep.subr.bf16.mxu0 0
        %1513 = vmatpush1.bf16.xpose.msra.mxu0 0
        %1514 = vmatprep.subr.bf16.mxu0 0
        %1515 = vmatpush1.bf16.xpose.msra.mxu0 0
        %1516 = vmatprep.subr.bf16.mxu0 0
        %1517 = vmatpush1.bf16.xpose.msra.mxu0 0
        %1518 = vmatprep.subr.bf16.mxu0 0
        %1519 = vmatpush1.bf16.xpose.msra.mxu0 0
        %1520 = vmatprep.subr.bf16.mxu0 0
        %1521 = vmatpush1.bf16.xpose.msra.mxu0 %v1504
        %1522 = vmatprep.subr.bf16.mxu0 0
        %1523 = vmatpush2.bf16.xpose.msra.mxu0 0
        %1524 = vmatprep.subr.bf16.mxu0 0
        %1525 = vmatpush2.bf16.xpose.msra.mxu0 0
        %1526 = vmatprep.subr.bf16.mxu0 0
        %1527 = vmatpush2.bf16.xpose.msra.mxu0 0
        %1528 = vmatprep.subr.bf16.mxu0 0
        %1529 = vmatpush2.bf16.xpose.msra.mxu0 0
        %1530 = vmatprep.subr.bf16.mxu0 0
        %1531 = vmatpush2.bf16.xpose.msra.mxu0 0
        %1532 = vmatprep.subr.bf16.mxu0 0
        %1533 = vmatpush2.bf16.xpose.msra.mxu0 0
        %1534 = vmatprep.subr.bf16.mxu0 0
        %1535 = vmatpush2.bf16.xpose.msra.mxu0 0
        %1536 = vmatprep.subr.bf16.mxu0 0
        %1537 = vmatpush2.bf16.xpose.msra.mxu0 0
        %1538 = vmatprep.mubr.bf16.mxu0 0
        %1539 = vmatmul.mubr.bf16.gmra.mxu0 %v583
        %v1540 = vpop.f32.mrf.mxu0
        %v1541 = vadd.f32 %v1502, %v1540
        %v1542 = vpop.f32.mrf.mxu0
        %v1543 = vpop.f32.mrf.mxu0
        %v1544 = vpop.f32.mrf.mxu0
        %1545 = vdwg.mxu0
        %v1546 = vmul.f32 %v1541, 0.35355338
        %v1547 = vld [vmem:[#allocation11 + $0xc] sm:$0xf]
        %v1548 = vld [vmem:[#allocation13 + $0x3] sm:$0x1]
        %v1549 = vlaneseq
        %v1550 = vshrl.u32 %v1549, 7
        %v1551 = vsub.s32 0, %v1550
        %v1552 = vrot.slane %v1548, %v1551
        %v1554 = vsel %vm581, %v1547, 0
        %1556 = vmatprep.subr.bf16.mxu0 0
        %1557 = vmatpush1.bf16.xpose.msra.mxu0 0
        %1558 = vmatprep.subr.bf16.mxu0 0
        %1559 = vmatpush1.bf16.xpose.msra.mxu0 0
        %1560 = vmatprep.subr.bf16.mxu0 0
        %1561 = vmatpush1.bf16.xpose.msra.mxu0 0
        %1562 = vmatprep.subr.bf16.mxu0 0
        %1563 = vmatpush1.bf16.xpose.msra.mxu0 0
        %1564 = vmatprep.subr.bf16.mxu0 0
        %1565 = vmatpush1.bf16.xpose.msra.mxu0 0
        %1566 = vmatprep.subr.bf16.mxu0 0
        %1567 = vmatpush1.bf16.xpose.msra.mxu0 0
        %1568 = vmatprep.subr.bf16.mxu0 0
        %1569 = vmatpush1.bf16.xpose.msra.mxu0 0
        %1570 = vmatprep.subr.bf16.mxu0 0
        %1571 = vmatpush1.bf16.xpose.msra.mxu0 %v1554
        %1572 = vmatprep.subr.bf16.mxu0 0
        %1573 = vmatpush2.bf16.xpose.msra.mxu0 0
        %1574 = vmatprep.subr.bf16.mxu0 0
        %1575 = vmatpush2.bf16.xpose.msra.mxu0 0
        %1576 = vmatprep.subr.bf16.mxu0 0
        %1577 = vmatpush2.bf16.xpose.msra.mxu0 0
        %1578 = vmatprep.subr.bf16.mxu0 0
        %1579 = vmatpush2.bf16.xpose.msra.mxu0 0
        %1580 = vmatprep.subr.bf16.mxu0 0
        %1581 = vmatpush2.bf16.xpose.msra.mxu0 0
        %1582 = vmatprep.subr.bf16.mxu0 0
        %1583 = vmatpush2.bf16.xpose.msra.mxu0 0
        %1584 = vmatprep.subr.bf16.mxu0 0
        %1585 = vmatpush2.bf16.xpose.msra.mxu0 0
        %1586 = vmatprep.subr.bf16.mxu0 0
        %1587 = vmatpush2.bf16.xpose.msra.mxu0 0
        %1588 = vmatprep.mubr.bf16.mxu0 0
        %1589 = vmatmul.mubr.bf16.gmra.mxu0 %v636
        %v1590 = vpop.f32.mrf.mxu0
        %v1591 = vadd.f32 %v1552, %v1590
        %v1592 = vpop.f32.mrf.mxu0
        %v1593 = vpop.f32.mrf.mxu0
        %v1594 = vpop.f32.mrf.mxu0
        %1595 = vdwg.mxu0
        %v1596 = vld [vmem:[#allocation14 + $0xc] sm:$0xf]
        %v1597 = vld [vmem:[#allocation16 + $0x3] sm:$0x1]
        %v1598 = vlaneseq
        %v1599 = vshrl.u32 %v1598, 7
        %v1600 = vsub.s32 0, %v1599
        %v1601 = vrot.slane %v1597, %v1600
        %v1603 = vsel %vm581, %v1596, 0
        %1605 = vmatprep.subr.bf16.mxu0 0
        %1606 = vmatpush1.bf16.xpose.msra.mxu0 0
        %1607 = vmatprep.subr.bf16.mxu0 0
        %1608 = vmatpush1.bf16.xpose.msra.mxu0 0
        %1609 = vmatprep.subr.bf16.mxu0 0
        %1610 = vmatpush1.bf16.xpose.msra.mxu0 0
        %1611 = vmatprep.subr.bf16.mxu0 0
        %1612 = vmatpush1.bf16.xpose.msra.mxu0 0
        %1613 = vmatprep.subr.bf16.mxu0 0
        %1614 = vmatpush1.bf16.xpose.msra.mxu0 0
        %1615 = vmatprep.subr.bf16.mxu0 0
        %1616 = vmatpush1.bf16.xpose.msra.mxu0 0
        %1617 = vmatprep.subr.bf16.mxu0 0
        %1618 = vmatpush1.bf16.xpose.msra.mxu0 0
        %1619 = vmatprep.subr.bf16.mxu0 0
        %1620 = vmatpush1.bf16.xpose.msra.mxu0 %v1603
        %1621 = vmatprep.subr.bf16.mxu0 0
        %1622 = vmatpush2.bf16.xpose.msra.mxu0 0
        %1623 = vmatprep.subr.bf16.mxu0 0
        %1624 = vmatpush2.bf16.xpose.msra.mxu0 0
        %1625 = vmatprep.subr.bf16.mxu0 0
        %1626 = vmatpush2.bf16.xpose.msra.mxu0 0
        %1627 = vmatprep.subr.bf16.mxu0 0
        %1628 = vmatpush2.bf16.xpose.msra.mxu0 0
        %1629 = vmatprep.subr.bf16.mxu0 0
        %1630 = vmatpush2.bf16.xpose.msra.mxu0 0
        %1631 = vmatprep.subr.bf16.mxu0 0
        %1632 = vmatpush2.bf16.xpose.msra.mxu0 0
        %1633 = vmatprep.subr.bf16.mxu0 0
        %1634 = vmatpush2.bf16.xpose.msra.mxu0 0
        %1635 = vmatprep.subr.bf16.mxu0 0
        %1636 = vmatpush2.bf16.xpose.msra.mxu0 0
        %1637 = vmatprep.mubr.bf16.mxu0 0
        %1638 = vmatmul.mubr.bf16.gmra.mxu0 %v688
        %v1639 = vpop.f32.mrf.mxu0
        %v1640 = vadd.f32 %v1601, %v1639
        %v1641 = vpop.f32.mrf.mxu0
        %v1642 = vpop.f32.mrf.mxu0
        %v1643 = vpop.f32.mrf.mxu0
        %1644 = vdwg.mxu0
        %v1645 = vpack.c.bf16 %v1546, %v1546
        %v1646 = vpack.c.bf16 %v1591, %v1591
        %v1648 = vsel %vm735, %v1645, 0
        %v1651 = vsel %vm735, %v1646, 0
        %1653 = vmatprep.subr.bf16.mxu0 0
        %1654 = vmatpush1.bf16.xpose.msra.mxu0 0
        %1655 = vmatprep.subr.bf16.mxu0 0
        %1656 = vmatpush1.bf16.xpose.msra.mxu0 0
        %1657 = vmatprep.subr.bf16.mxu0 0
        %1658 = vmatpush1.bf16.xpose.msra.mxu0 0
        %1659 = vmatprep.subr.bf16.mxu0 0
        %1660 = vmatpush1.bf16.xpose.msra.mxu0 0
        %1661 = vmatprep.subr.bf16.mxu0 0
        %1662 = vmatpush1.bf16.xpose.msra.mxu0 0
        %1663 = vmatprep.subr.bf16.mxu0 0
        %1664 = vmatpush1.bf16.xpose.msra.mxu0 0
        %1665 = vmatprep.subr.bf16.mxu0 0
        %1666 = vmatpush1.bf16.xpose.msra.mxu0 0
        %1667 = vmatprep.subr.bf16.mxu0 0
        %1668 = vmatpush1.bf16.xpose.msra.mxu0 %v1651
        %1669 = vmatprep.subr.bf16.mxu0 0
        %1670 = vmatpush2.bf16.xpose.msra.mxu0 0
        %1671 = vmatprep.subr.bf16.mxu0 0
        %1672 = vmatpush2.bf16.xpose.msra.mxu0 0
        %1673 = vmatprep.subr.bf16.mxu0 0
        %1674 = vmatpush2.bf16.xpose.msra.mxu0 0
        %1675 = vmatprep.subr.bf16.mxu0 0
        %1676 = vmatpush2.bf16.xpose.msra.mxu0 0
        %1677 = vmatprep.subr.bf16.mxu0 0
        %1678 = vmatpush2.bf16.xpose.msra.mxu0 0
        %1679 = vmatprep.subr.bf16.mxu0 0
        %1680 = vmatpush2.bf16.xpose.msra.mxu0 0
        %1681 = vmatprep.subr.bf16.mxu0 0
        %1682 = vmatpush2.bf16.xpose.msra.mxu0 0
        %1683 = vmatprep.subr.bf16.mxu0 0
        %1684 = vmatpush2.bf16.xpose.msra.mxu0 0
        %1685 = vmatprep.mubr.bf16.mxu0 0
        %1686 = vmatmul.mubr.bf16.gmra.mxu0 %v1648
        %v1687 = vpop.f32.mrf.mxu0
        %v1688 = vadd.f32 0.0, %v1687
        %v1689 = vpop.f32.mrf.mxu0
        %v1690 = vpop.f32.mrf.mxu0
        %v1691 = vpop.f32.mrf.mxu0
        %1692 = vdwg.mxu0
        %v1693 = vsel %vm735, %v1688, -inf
        %1694 = vmax.xlane.f32.xlu0 %v1693
        %v1695 = vpop.xlane.xlu0 %1694
        %v1696 = vsub.f32 %v1688, %v1695
        %v1697 = vmul.f32 %v1696, 1.442695
        %v1698 = vpow.pop %v1697
        %v1699 = vsel %vm735, %v1698, 0.0
        %1700 = vadd.xlane.f32.xlu0 %v1699
        %v1701 = vpop.xlane.xlu0 %1700
        %v1702 = vrcp.pop %v1701
        %v1703 = vmul.f32 %v1698, %v1702
        %v1704 = vpack.c.bf16 %v1703, %v1703
        %v1705 = vpack.c.bf16 %v1640, %v1640
        %v1707 = vsel %vm735, %v1704, 0
        %v1710 = vsel %vm798, %v1705, 0
        %1712 = vmatprep.subr.bf16.mxu0 0
        %1713 = vmatpush1.bf16.msra.mxu0 0
        %1714 = vmatprep.subr.bf16.mxu0 0
        %1715 = vmatpush1.bf16.msra.mxu0 0
        %1716 = vmatprep.subr.bf16.mxu0 0
        %1717 = vmatpush1.bf16.msra.mxu0 0
        %1718 = vmatprep.subr.bf16.mxu0 0
        %1719 = vmatpush1.bf16.msra.mxu0 0
        %1720 = vmatprep.subr.bf16.mxu0 0
        %1721 = vmatpush1.bf16.msra.mxu0 0
        %1722 = vmatprep.subr.bf16.mxu0 0
        %1723 = vmatpush1.bf16.msra.mxu0 0
        %1724 = vmatprep.subr.bf16.mxu0 0
        %1725 = vmatpush1.bf16.msra.mxu0 0
        %1726 = vmatprep.subr.bf16.mxu0 0
        %1727 = vmatpush1.bf16.msra.mxu0 %v1710
        %1728 = vmatprep.subr.bf16.mxu0 0
        %1729 = vmatpush2.bf16.msra.mxu0 0
        %1730 = vmatprep.subr.bf16.mxu0 0
        %1731 = vmatpush2.bf16.msra.mxu0 0
        %1732 = vmatprep.subr.bf16.mxu0 0
        %1733 = vmatpush2.bf16.msra.mxu0 0
        %1734 = vmatprep.subr.bf16.mxu0 0
        %1735 = vmatpush2.bf16.msra.mxu0 0
        %1736 = vmatprep.subr.bf16.mxu0 0
        %1737 = vmatpush2.bf16.msra.mxu0 0
        %1738 = vmatprep.subr.bf16.mxu0 0
        %1739 = vmatpush2.bf16.msra.mxu0 0
        %1740 = vmatprep.subr.bf16.mxu0 0
        %1741 = vmatpush2.bf16.msra.mxu0 0
        %1742 = vmatprep.subr.bf16.mxu0 0
        %1743 = vmatpush2.bf16.msra.mxu0 0
        %1744 = vmatprep.mubr.bf16.mxu0 0
        %1745 = vmatmul.mubr.bf16.gmra.mxu0 %v1707
        %v1746 = vpop.f32.mrf.mxu0
        %v1747 = vadd.f32 0.0, %v1746
        %v1748 = vpop.f32.mrf.mxu0
        %v1749 = vpop.f32.mrf.mxu0
        %v1750 = vpop.f32.mrf.mxu0
        %1751 = vdwg.mxu0
        %v1752 = vpack.c.bf16 %v1747, %v1747
        %v1753 = vld [vmem:[%s9 + $0xc] sm:$0xf]
        %v1755 = vsel %vm735, %v1752, 0
        %v1758 = vsel %vm798, %v1753, 0
        %1760 = vmatprep.subr.bf16.mxu0 0
        %1761 = vmatpush1.bf16.msra.mxu0 0
        %1762 = vmatprep.subr.bf16.mxu0 0
        %1763 = vmatpush1.bf16.msra.mxu0 0
        %1764 = vmatprep.subr.bf16.mxu0 0
        %1765 = vmatpush1.bf16.msra.mxu0 0
        %1766 = vmatprep.subr.bf16.mxu0 0
        %1767 = vmatpush1.bf16.msra.mxu0 0
        %1768 = vmatprep.subr.bf16.mxu0 0
        %1769 = vmatpush1.bf16.msra.mxu0 0
        %1770 = vmatprep.subr.bf16.mxu0 0
        %1771 = vmatpush1.bf16.msra.mxu0 0
        %1772 = vmatprep.subr.bf16.mxu0 0
        %1773 = vmatpush1.bf16.msra.mxu0 0
        %1774 = vmatprep.subr.bf16.mxu0 0
        %1775 = vmatpush1.bf16.msra.mxu0 %v1758
        %1776 = vmatprep.subr.bf16.mxu0 0
        %1777 = vmatpush2.bf16.msra.mxu0 0
        %1778 = vmatprep.subr.bf16.mxu0 0
        %1779 = vmatpush2.bf16.msra.mxu0 0
        %1780 = vmatprep.subr.bf16.mxu0 0
        %1781 = vmatpush2.bf16.msra.mxu0 0
        %1782 = vmatprep.subr.bf16.mxu0 0
        %1783 = vmatpush2.bf16.msra.mxu0 0
        %1784 = vmatprep.subr.bf16.mxu0 0
        %1785 = vmatpush2.bf16.msra.mxu0 0
        %1786 = vmatprep.subr.bf16.mxu0 0
        %1787 = vmatpush2.bf16.msra.mxu0 0
        %1788 = vmatprep.subr.bf16.mxu0 0
        %1789 = vmatpush2.bf16.msra.mxu0 0
        %1790 = vmatprep.subr.bf16.mxu0 0
        %1791 = vmatpush2.bf16.msra.mxu0 0
        %1792 = vmatprep.mubr.bf16.mxu0 0
        %1793 = vmatmul.mubr.bf16.gmra.mxu0 %v1755
        %v1794 = vpop.f32.mrf.mxu0
        %v1795 = vadd.f32 0.0, %v1794
        %v1796 = vpop.f32.mrf.mxu0
        %v1797 = vpop.f32.mrf.mxu0
        %v1798 = vpop.f32.mrf.mxu0
        %1799 = vdwg.mxu0
        %v1800 = vadd.f32 %v1496, %v1795
        %v1801 = vld [vmem:[%s10] sm:$0x1]
        %v1803 = vlaneseq
        %v1804 = vshrl.u32 %v1803, 7
        %v1805 = vsub.s32 0, %v1804
        %v1806 = vrot.slane %v1801, %v1805
        %v1808 = vadd.f32 %v1800, %v1806
        %1809 = vst.msk [vmem:[%s570] sm:$0xff] %vm581, %v1808
        %s1810 = sand.u32 %s304, 1
        %s1811 = scalar_lea.sflag [#allocation4], %s1810
        %s1812 = sand.u32 %s304, 1
        %s1813 = smul.addr %s1812, 8
        %s1814 = scalar_lea.vmem [#allocation17], %s1813
        // Predicated region
        $region101: #{tpu_custom_call.1} parent=63 // pred_check
          %p1815 = pneg %p314
        $region102: #{tpu_custom_call.1} parent=63 // pred_check_branch
          %1817 = sbr.rel (%p1815) target = $region104
        $region103: #{tpu_custom_call.1} parent=63 // pred_region
          %s1819 = ssub.s32 128, 128
          %1820 = vsyncadd %s1811, %s1819
          %s1821 = sadd.s32 %s39, %s38
          %s1822 = smul.addr %s1821, 128
          %s1823 = scalar_lea.hbm %s11, %s1822
          %s1825 = sshll.u32 %s1814, 4
          %s1826 = int_to_ptr.vmem [resolvable:$true] %s1825
          %1828 = dma.vmem_to_hbm [thread:$0]  %s1826, 128, %s1823, %s1811
        $region104: #{tpu_custom_call.1} parent=63 // pred_fallthru
          _
      $region64: #{tpu_custom_call.1} parent=5 // pred_fallthru
        _
      %p1829 = scmp.le.s32.totalorder 2, %s29
      // Predicated region
      $region105: #{tpu_custom_call.1} parent=5 // pred_check
        %p1830 = pneg %p1829
      $region106: #{tpu_custom_call.1} parent=5 // pred_check_branch
        %1832 = sbr.rel (%p1830) target = $region108
      $region107: #{tpu_custom_call.1} parent=5 // pred_region
        %s1833 = ssub.s32 %s29, 2
        // Predicated region
        $region109: #{tpu_custom_call.1} parent=107 // pred_check
          %p1834 = pneg %p320
        $region110: #{tpu_custom_call.1} parent=107 // pred_check_branch
          %1836 = sbr.rel (%p1834) target = $region112
        $region111: #{tpu_custom_call.1} parent=107 // pred_region
          %s1837 = sand.u32 %s305, 1
          %s1838 = scalar_lea.sflag [#allocation4], %s1837
          %s1839 = sand.u32 %s305, 1
          %s1840 = smul.addr %s1839, 8
          %s1841 = scalar_lea.vmem [#allocation17], %s1840
          %1842 = dma.done %s1838, 128
        $region112: #{tpu_custom_call.1} parent=107 // pred_fallthru
          _
      $region108: #{tpu_custom_call.1} parent=5 // pred_fallthru
        _
    $region6: #{tpu_custom_call.1} parent=1 // loop_footer
      %s33 = sadd.s32 1, %s29
    $region7: #{tpu_custom_call.1} parent=1 // loop_footer_branch
      %28 = sbr.rel target = $region3
    $region8: #{tpu_custom_call.1} parent=1 // loop_exit
      _
    %1843 = vsyncpa [#allocation3], 1
    %s1844 = scalar_lea.sflag [#allocation3], 1
    %1845 = vsyncpa %s1844, 1
    %1846 = vsyncpa [#allocation6], 1
    %s1847 = scalar_lea.sflag [#allocation6], 1
    %1848 = vsyncpa %s1847, 1
    %1849 = vsyncpa [#allocation9], 1
    %1850 = vsyncpa [#allocation12], 1
    %1851 = vsyncpa [#allocation15], 1
    %1852 = vsyncpa [#allocation4], 1
    %s1853 = scalar_lea.sflag [#allocation4], 1
    %1854 = vsyncpa %s1853, 1

</llo_original>
